<compile_context>
chip_gen: v7x
topology: tpu7x:2x2x1
jax: 0.10.0
libtpu: 0.0.40
codegen_flags: <defaults>
</compile_context>

<pallas_src>
import functools

import jax
import jax.numpy as jnp
from jax import lax
from jax.experimental import pallas as pl
from jax.experimental.pallas import tpu as pltpu


# ---------------------------------------------------------------------------
# Fused kernel body
# ---------------------------------------------------------------------------
def fcn_fused_kernel(xcol_ref,
                     w1_ref, s1_ref, h1_ref,
                     w2_ref, s2_ref, h2_ref,
                     w3_ref, s3_ref, h3_ref,
                     wf_ref, bf_ref,
                     o_ref,
                     halo2_ref, halo3_ref,
                     *, L_true):
    Bn, Lp, _ = xcol_ref.shape
    K2 = w2_ref.shape[0]
    K3 = w3_ref.shape[0]
    p2 = (K2 - 1) // 2                      # symmetric 'same' pad (K odd)
    p3 = (K3 - 1) // 2

    # Zero only the halo border rows, every step.  The interior is fully
    # overwritten below before any read, so there is no cross-step (or
    # cross-TensorCore) initialization dependency.
    def zero_borders(h_ref, pad_l):
        C = h_ref.shape[-1]
        Lh = h_ref.shape[1]
        h_ref[:, :pad_l, :] = jnp.zeros((Bn, pad_l, C), h_ref.dtype)
        h_ref[:, pad_l + Lp:Lh, :] = jnp.zeros((Bn, Lh - pad_l - Lp, C),
                                               h_ref.dtype)

    zero_borders(halo2_ref, p2)
    zero_borders(halo3_ref, p3)

    # Sequence mask: zero out pad positions (>= L_true) so they behave exactly
    # like the conv's own zero padding for the next block / the mean.
    if L_true < Lp:
        seq_mask = lax.broadcasted_iota(jnp.int32, (1, Lp, 1), 1) < L_true
    else:
        seq_mask = None

    def epilogue(y, s_ref, h_ref, cout):
        # folded BN (+ conv bias) + ReLU, then (optional) pad-position mask.
        y = y * s_ref[...] + h_ref[...]
        y = jnp.maximum(y, 0.0).reshape(Bn, Lp, cout)
        if seq_mask is not None:
            y = jnp.where(seq_mask, y, 0.0)
        return y

    def conv_taps(halo_ref, w_ref, K):
        # 'same' conv as K accumulated MXU matmuls over shifted halo views.
        cout = w_ref.shape[-1]
        acc = jnp.zeros((Bn * Lp, cout), jnp.float32)
        for k in range(K):
            tap = halo_ref[:, k:k + Lp, :].reshape(Bn * Lp, -1)
            acc += jnp.dot(tap, w_ref[k], preferred_element_type=jnp.float32)
        return acc

    # --- block 1: input im2col'ed (and lane-padded) in the wrapper ----------
    p1 = xcol_ref[...].reshape(Bn * Lp, -1)                    # (Bn*Lp, KC1p)
    y1 = jnp.dot(p1, w1_ref[...], preferred_element_type=jnp.float32)
    a1 = epilogue(y1, s1_ref, h1_ref, w1_ref.shape[-1])        # (Bn, Lp, 128)

    # --- block 2: per-tap matmuls from halo scratch (contraction 128) -------
    halo2_ref[:, p2:p2 + Lp, :] = a1.astype(jnp.bfloat16)
    a2 = epilogue(conv_taps(halo2_ref, w2_ref, K2),
                  s2_ref, h2_ref, w2_ref.shape[-1])            # (Bn, Lp, 256)

    # --- block 3: per-tap matmuls from halo scratch (contraction 256) -------
    halo3_ref[:, p3:p3 + Lp, :] = a2.astype(jnp.bfloat16)
    a3 = epilogue(conv_taps(halo3_ref, w3_ref, K3),
                  s3_ref, h3_ref, w3_ref.shape[-1])            # (Bn, Lp, 128)

    # --- head: sum over true L (1/L folded into final_w) + Linear -----------
    feat = jnp.sum(a3, axis=1)                                 # (Bn, 128) f32
    out = jnp.dot(feat, wf_ref[...],
                  preferred_element_type=jnp.float32) + bf_ref[...]
    o_ref[...] = out[None, :, :]                               # (1, Bn, ncls)


# ---------------------------------------------------------------------------
# Parameter prep: fold 1/factor into block-1 weights and 1/L into the final
# Linear; flatten block-1 to im2col layout (lane-padded); keep blocks 2/3 in
# per-tap (K, Cin, Cout) layout; cast conv matmul operands to bf16.
# ---------------------------------------------------------------------------
def prepare_kernel_params(params, factor, seq_len):
    b1, b2, b3 = params["blocks"]

    w1 = b1["w"] / factor                                      # (K1, Cin, 128)
    K1, Cin, C1 = w1.shape
    kc1 = K1 * Cin
    kc1p = pl.cdiv(kc1, 128) * 128                             # lane-dense
    w1 = jnp.pad(w1.reshape(kc1, C1),
                 ((0, kc1p - kc1), (0, 0))).astype(jnp.bfloat16)

    def bn(blk):
        c = blk["scale"].shape[0]
        return (blk["scale"].reshape(1, c).astype(jnp.float32),
                blk["shift"].reshape(1, c).astype(jnp.float32))

    s1, h1 = bn(b1)
    s2, h2 = bn(b2)
    s3, h3 = bn(b3)

    ncls = params["final_w"].shape[1]
    return dict(
        K1=K1, K2=b2["w"].shape[0], K3=b3["w"].shape[0], kc1p=kc1p, ncls=ncls,
        w1=w1, s1=s1, h1=h1,
        w2=b2["w"].astype(jnp.bfloat16), s2=s2, h2=h2,       # (K2, 128, 256)
        w3=b3["w"].astype(jnp.bfloat16), s3=s3, h3=h3,       # (K3, 256, 128)
        wf=(params["final_w"] / float(seq_len)).astype(jnp.float32),
        bf=params["final_b"].reshape(1, ncls).astype(jnp.float32))


def _replicated(arr):
    nd = arr.ndim
    # NOTE: single-buffering these grid-invariant inputs (pipeline_mode=
    # pl.Buffered(1)) would save a little VMEM on v7x; skipped for portability.
    return pl.BlockSpec(arr.shape, lambda n, _z=(0,) * nd: _z)


def fcn_baseline_pallas(x_ncw, params, factor=1.0, target_rows=1024):
    N, Cin, L = x_ncw.shape
    kp = prepare_kernel_params(params, factor, L)
    K1, K2, K3 = kp["K1"], kp["K2"], kp["K3"]
    ncls = kp["ncls"]
    kc1p = kp["kc1p"]

    # Sequence padded to a multiple of 16 (bf16 sublane packing).
    Lp = pl.cdiv(L, 16) * 16

    # Batch tile: ~target_rows MXU rows per step, capped by N; force >= 2 grid
    # steps when possible so both v7x TensorCores get work ("parallel" axis).
    Bn = max(1, min(N, max(1, target_rows // Lp)))
    if N > 1 and pl.cdiv(N, Bn) < 2:
        Bn = pl.cdiv(N, 2)
    Np = pl.cdiv(N, Bn) * Bn
    G = Np // Bn

    # NCW -> NLC (channels on lanes); zero-pad batch, seq tail, and the conv
    # halo; im2col the tiny input for block 1 in the wrapper; pad the
    # contraction dim to a lane-dense multiple of 128; cast to bf16.
    pl1 = (K1 - 1) // 2
    pr1 = (K1 - 1) - pl1
    x_nlc = jnp.transpose(x_ncw, (0, 2, 1)).astype(jnp.float32)
    xp = jnp.pad(x_nlc, ((0, Np - N), (pl1, (Lp - L) + pr1), (0, 0)))
    xcol = jnp.concatenate([xp[:, k:k + Lp, :] for k in range(K1)], axis=-1)
    xcol = jnp.pad(xcol, ((0, 0), (0, 0), (0, kc1p - K1 * Cin)))
    xcol = xcol.astype(jnp.bfloat16)                           # (Np, Lp, kc1p)

    c2_in = kp["w2"].shape[1]   # 128
    c3_in = kp["w3"].shape[1]   # 256

    kernel = functools.partial(fcn_fused_kernel, L_true=L)

    out = pl.pallas_call(
        kernel,
        out_shape=jax.ShapeDtypeStruct((G, Bn, ncls), jnp.float32),
        grid=(G,),
        in_specs=[
            pl.BlockSpec((Bn, Lp, kc1p), lambda n: (n, 0, 0)),
            _replicated(kp["w1"]), _replicated(kp["s1"]), _replicated(kp["h1"]),
            _replicated(kp["w2"]), _replicated(kp["s2"]), _replicated(kp["h2"]),
            _replicated(kp["w3"]), _replicated(kp["s3"]), _replicated(kp["h3"]),
            _replicated(kp["wf"]), _replicated(kp["bf"]),
        ],
        out_specs=pl.BlockSpec((1, Bn, ncls), lambda n: (n, 0, 0)),
        scratch_shapes=[
            pltpu.VMEM((Bn, Lp + K2 - 1, c2_in), jnp.bfloat16),   # block-2 halo
            pltpu.VMEM((Bn, Lp + K3 - 1, c3_in), jnp.bfloat16),   # block-3 halo
        ],
        compiler_params=pltpu.CompilerParams(
            dimension_semantics=("parallel",),
            vmem_limit_bytes=32 * 1024 * 1024),
    )(xcol,
      kp["w1"], kp["s1"], kp["h1"],
      kp["w2"], kp["s2"], kp["h2"],
      kp["w3"], kp["s3"], kp["h3"],
      kp["wf"], kp["bf"])
    return out.reshape(Np, ncls)[:N]


# ---------------------------------------------------------------------------
# Deterministic synthetic parameters (eval-mode BN folded to scale/shift).
# ---------------------------------------------------------------------------
def make_params(key, in_channels, num_pred_classes):
    specs = [(in_channels, 128, 8), (128, 256, 5), (256, 128, 3)]
    params = {"blocks": []}
    eps = 1e-5
    for (cin, cout, k) in specs:
        key, k1, k2, k3, k4, k5, k6 = jax.random.split(key, 7)
        w = jax.random.normal(k1, (k, cin, cout), jnp.float32) * (1.0 / (cin * k) ** 0.5)
        conv_b = jax.random.normal(k2, (cout,), jnp.float32) * 0.05
        gamma = 1.0 + 0.1 * jax.random.normal(k3, (cout,), jnp.float32)
        beta = 0.1 * jax.random.normal(k4, (cout,), jnp.float32)
        run_mean = 0.1 * jax.random.normal(k5, (cout,), jnp.float32)
        run_var = jnp.abs(jax.random.normal(k6, (cout,), jnp.float32)) + 0.5
        scale = gamma / jnp.sqrt(run_var + eps)            # folded BN (eval mode)
        shift = (conv_b - run_mean) * scale + beta
        params["blocks"].append({"w": w, "scale": scale, "shift": shift})
    key, k1, k2 = jax.random.split(key, 3)
    params["final_w"] = jax.random.normal(k1, (128, num_pred_classes), jnp.float32) * (1.0 / 128 ** 0.5)
    params["final_b"] = 0.05 * jax.random.normal(k2, (num_pred_classes,), jnp.float32)
    return params


# ---------------------------------------------------------------------------
# Pure-JAX reference mirroring the PyTorch forward (same bf16 conv operands,
# f32 accumulation) for the correctness check.
# ---------------------------------------------------------------------------
def fcn_baseline_ref(x_ncw, params, factor=1.0):
    x = x_ncw.astype(jnp.float32) / factor
    for blk in params["blocks"]:
        w_oik = jnp.transpose(blk["w"], (2, 1, 0))         # (Cout, Cin, K) PyTorch layout
        K = w_oik.shape[-1]
        pad_l = (K - 1) // 2
        pad_r = (K - 1) - pad_l
        y = lax.conv_general_dilated(
            x.astype(jnp.bfloat16), w_oik.astype(jnp.bfloat16),
            window_strides=(1,), padding=[(pad_l, pad_r)],
            dimension_numbers=("NCH", "OIH", "NCH"),
            preferred_element_type=jnp.float32)
        y = y * blk["scale"][None, :, None] + blk["shift"][None, :, None]
        x = jnp.maximum(y, 0.0)
    feat = jnp.mean(x, axis=-1)                            # (N, 128)
    return feat @ params["final_w"] + params["final_b"]


if __name__ == "__main__":
    N, C_IN, L, NCLS = 2, 4, 16, 3
    FACTOR = 2.0

    key = jax.random.PRNGKey(0)
    kx, kparams = jax.random.split(key)
    x = jax.random.normal(kx, (N, C_IN, L), jnp.float32)   # PyTorch NCW input
    params = make_params(kparams, C_IN, NCLS)

    out = jax.block_until_ready(fcn_baseline_pallas(x, params, factor=FACTOR))
    ref = jax.block_until_ready(fcn_baseline_ref(x, params, factor=FACTOR))

    assert out.shape == (N, NCLS), out.shape
    # bf16 matmul operands (f32 accumulation) -> loosened tolerance.
    assert jnp.allclose(out, ref, rtol=2e-2, atol=2e-2), (out, ref)

    print("KERNEL_OK")
</pallas_src>

<mosaic_0001>
module attributes {stable_mosaic.version = 11 : i64} {
  func.func @fcn_fused_kernel(%arg0: i32, %arg1: memref<1x16x128xbf16, #tpu.memory_space<vmem>>, %arg2: memref<128x128xbf16, #tpu.memory_space<vmem>>, %arg3: memref<1x128xf32, #tpu.memory_space<vmem>>, %arg4: memref<1x128xf32, #tpu.memory_space<vmem>>, %arg5: memref<5x128x256xbf16, #tpu.memory_space<vmem>>, %arg6: memref<1x256xf32, #tpu.memory_space<vmem>>, %arg7: memref<1x256xf32, #tpu.memory_space<vmem>>, %arg8: memref<3x256x128xbf16, #tpu.memory_space<vmem>>, %arg9: memref<1x128xf32, #tpu.memory_space<vmem>>, %arg10: memref<1x128xf32, #tpu.memory_space<vmem>>, %arg11: memref<128x3xf32, #tpu.memory_space<vmem>>, %arg12: memref<1x3xf32, #tpu.memory_space<vmem>>, %arg13: memref<1x1x3xf32, #tpu.memory_space<vmem>>, %arg14: memref<1x20x128xbf16, #tpu.memory_space<vmem>>, %arg15: memref<1x18x256xbf16, #tpu.memory_space<vmem>>) attributes {dimension_semantics = [#tpu.dimension_semantics<parallel>], iteration_bounds = array<i64: 2>, scalar_prefetch = 0 : i64, scratch_operands = 2 : i64, tpu.core_type = #tpu.core_type<tc>, window_params = [{transform_indices = @transform_0, window_bounds = array<i64: 1, 16, 128>}, {pipeline_mode = #tpu.pipeline_mode<synchronous>, transform_indices = @transform_1, window_bounds = array<i64: 128, 128>}, {pipeline_mode = #tpu.pipeline_mode<synchronous>, transform_indices = @transform_2, window_bounds = array<i64: 1, 128>}, {pipeline_mode = #tpu.pipeline_mode<synchronous>, transform_indices = @transform_3, window_bounds = array<i64: 1, 128>}, {pipeline_mode = #tpu.pipeline_mode<synchronous>, transform_indices = @transform_4, window_bounds = array<i64: 5, 128, 256>}, {pipeline_mode = #tpu.pipeline_mode<synchronous>, transform_indices = @transform_5, window_bounds = array<i64: 1, 256>}, {pipeline_mode = #tpu.pipeline_mode<synchronous>, transform_indices = @transform_6, window_bounds = array<i64: 1, 256>}, {pipeline_mode = #tpu.pipeline_mode<synchronous>, transform_indices = @transform_7, window_bounds = array<i64: 3, 256, 128>}, {pipeline_mode = #tpu.pipeline_mode<synchronous>, transform_indices = @transform_8, window_bounds = array<i64: 1, 128>}, {pipeline_mode = #tpu.pipeline_mode<synchronous>, transform_indices = @transform_9, window_bounds = array<i64: 1, 128>}, {pipeline_mode = #tpu.pipeline_mode<synchronous>, transform_indices = @transform_10, window_bounds = array<i64: 128, 3>}, {pipeline_mode = #tpu.pipeline_mode<synchronous>, transform_indices = @transform_11, window_bounds = array<i64: 1, 3>}, {transform_indices = @transform_12, window_bounds = array<i64: 1, 1, 3>}]} {
    %cst = arith.constant 0.000000e+00 : bf16
    %0 = vector.broadcast %cst : bf16 to vector<1x2x128xbf16>
    %c0 = arith.constant 0 : index
    %c0_0 = arith.constant 0 : index
    %c0_1 = arith.constant 0 : index
    %1 = vector.load %arg14[%c0, %c0_0, %c0_1] : memref<1x20x128xbf16, #tpu.memory_space<vmem>>, vector<1x2x128xbf16>
    tpu.vector_store %arg14[%c0, %c0_0, %c0_1], %0 {strides = array<i32>} : memref<1x20x128xbf16, #tpu.memory_space<vmem>>, vector<1x2x128xbf16>,
    %cst_2 = arith.constant 0.000000e+00 : bf16
    %2 = vector.broadcast %cst_2 : bf16 to vector<1x2x128xbf16>
    %c0_3 = arith.constant 0 : index
    %c18 = arith.constant 18 : index
    %c0_4 = arith.constant 0 : index
    %3 = vector.load %arg14[%c0_3, %c18, %c0_4] : memref<1x20x128xbf16, #tpu.memory_space<vmem>>, vector<1x2x128xbf16>
    tpu.vector_store %arg14[%c0_3, %c18, %c0_4], %2 {strides = array<i32>} : memref<1x20x128xbf16, #tpu.memory_space<vmem>>, vector<1x2x128xbf16>,
    %cst_5 = arith.constant 0.000000e+00 : bf16
    %4 = vector.broadcast %cst_5 : bf16 to vector<1x1x256xbf16>
    %c0_6 = arith.constant 0 : index
    %c0_7 = arith.constant 0 : index
    %c0_8 = arith.constant 0 : index
    %5 = vector.load %arg15[%c0_6, %c0_7, %c0_8] : memref<1x18x256xbf16, #tpu.memory_space<vmem>>, vector<1x1x256xbf16>
    tpu.vector_store %arg15[%c0_6, %c0_7, %c0_8], %4 {strides = array<i32>} : memref<1x18x256xbf16, #tpu.memory_space<vmem>>, vector<1x1x256xbf16>,
    %cst_9 = arith.constant 0.000000e+00 : bf16
    %6 = vector.broadcast %cst_9 : bf16 to vector<1x1x256xbf16>
    %c0_10 = arith.constant 0 : index
    %c17 = arith.constant 17 : index
    %c0_11 = arith.constant 0 : index
    %7 = vector.load %arg15[%c0_10, %c17, %c0_11] : memref<1x18x256xbf16, #tpu.memory_space<vmem>>, vector<1x1x256xbf16>
    tpu.vector_store %arg15[%c0_10, %c17, %c0_11], %6 {strides = array<i32>} : memref<1x18x256xbf16, #tpu.memory_space<vmem>>, vector<1x1x256xbf16>,
    %c0_12 = arith.constant 0 : index
    %c0_13 = arith.constant 0 : index
    %c0_14 = arith.constant 0 : index
    %8 = vector.load %arg1[%c0_12, %c0_13, %c0_14] : memref<1x16x128xbf16, #tpu.memory_space<vmem>>, vector<1x16x128xbf16>
    %9 = vector.shape_cast %8 : vector<1x16x128xbf16> to vector<16x128xbf16>
    %c0_15 = arith.constant 0 : index
    %c0_16 = arith.constant 0 : index
    %10 = vector.load %arg2[%c0_15, %c0_16] : memref<128x128xbf16, #tpu.memory_space<vmem>>, vector<128x128xbf16>
    %cst_17 = arith.constant dense<0.000000e+00> : vector<16x128xf32>
    %11 = tpu.matmul %9, %10, %cst_17 {dimension_numbers = #tpu.dot_dimension_numbers<[1], [0], [0], [1], [0, 0, 1, 1], [], []>} : vector<16x128xbf16>, vector<128x128xbf16>, vector<16x128xf32> -> vector<16x128xf32>
    %c0_18 = arith.constant 0 : index
    %c0_19 = arith.constant 0 : index
    %12 = vector.load %arg3[%c0_18, %c0_19] : memref<1x128xf32, #tpu.memory_space<vmem>>, vector<1x128xf32>
    %13 = vector.broadcast %12 : vector<1x128xf32> to vector<16x128xf32>
    %14 = arith.mulf %11, %13 : vector<16x128xf32>
    %c0_20 = arith.constant 0 : index
    %c0_21 = arith.constant 0 : index
    %15 = vector.load %arg4[%c0_20, %c0_21] : memref<1x128xf32, #tpu.memory_space<vmem>>, vector<1x128xf32>
    %16 = vector.broadcast %15 : vector<1x128xf32> to vector<16x128xf32>
    %17 = arith.addf %14, %16 : vector<16x128xf32>
    %cst_22 = arith.constant 0.000000e+00 : f32
    %18 = vector.broadcast %cst_22 : f32 to vector<16x128xf32>
    %19 = arith.maximumf %17, %18 : vector<16x128xf32>
    %20 = vector.shape_cast %19 : vector<16x128xf32> to vector<1x16x128xf32>
    %21 = arith.truncf %20 : vector<1x16x128xf32> to vector<1x16x128xbf16>
    %c0_23 = arith.constant 0 : index
    %c2 = arith.constant 2 : index
    %c0_24 = arith.constant 0 : index
    %22 = vector.load %arg14[%c0_23, %c2, %c0_24] : memref<1x20x128xbf16, #tpu.memory_space<vmem>>, vector<1x16x128xbf16>
    tpu.vector_store %arg14[%c0_23, %c2, %c0_24], %21 {strides = array<i32>} : memref<1x20x128xbf16, #tpu.memory_space<vmem>>, vector<1x16x128xbf16>,
    %cst_25 = arith.constant 0.000000e+00 : f32
    %23 = vector.broadcast %cst_25 : f32 to vector<16x256xf32>
    %c0_26 = arith.constant 0 : index
    %c0_27 = arith.constant 0 : index
    %c0_28 = arith.constant 0 : index
    %24 = vector.load %arg14[%c0_26, %c0_27, %c0_28] : memref<1x20x128xbf16, #tpu.memory_space<vmem>>, vector<1x16x128xbf16>
    %25 = vector.shape_cast %24 : vector<1x16x128xbf16> to vector<16x128xbf16>
    %c0_29 = arith.constant 0 : index
    %c0_30 = arith.constant 0 : index
    %c0_31 = arith.constant 0 : index
    %26 = vector.load %arg5[%c0_29, %c0_30, %c0_31] : memref<5x128x256xbf16, #tpu.memory_space<vmem>>, vector<1x128x256xbf16>
    %27 = vector.shape_cast %26 : vector<1x128x256xbf16> to vector<128x256xbf16>
    %cst_32 = arith.constant dense<0.000000e+00> : vector<16x256xf32>
    %28 = tpu.matmul %25, %27, %cst_32 {dimension_numbers = #tpu.dot_dimension_numbers<[1], [0], [0], [1], [0, 0, 1, 1], [], []>} : vector<16x128xbf16>, vector<128x256xbf16>, vector<16x256xf32> -> vector<16x256xf32>
    %29 = arith.addf %23, %28 : vector<16x256xf32>
    %c0_33 = arith.constant 0 : index
    %c1 = arith.constant 1 : index
    %c0_34 = arith.constant 0 : index
    %30 = vector.load %arg14[%c0_33, %c1, %c0_34] : memref<1x20x128xbf16, #tpu.memory_space<vmem>>, vector<1x16x128xbf16>
    %31 = vector.shape_cast %30 : vector<1x16x128xbf16> to vector<16x128xbf16>
    %c1_35 = arith.constant 1 : index
    %c0_36 = arith.constant 0 : index
    %c0_37 = arith.constant 0 : index
    %32 = vector.load %arg5[%c1_35, %c0_36, %c0_37] : memref<5x128x256xbf16, #tpu.memory_space<vmem>>, vector<1x128x256xbf16>
    %33 = vector.shape_cast %32 : vector<1x128x256xbf16> to vector<128x256xbf16>
    %cst_38 = arith.constant dense<0.000000e+00> : vector<16x256xf32>
    %34 = tpu.matmul %31, %33, %cst_38 {dimension_numbers = #tpu.dot_dimension_numbers<[1], [0], [0], [1], [0, 0, 1, 1], [], []>} : vector<16x128xbf16>, vector<128x256xbf16>, vector<16x256xf32> -> vector<16x256xf32>
    %35 = arith.addf %29, %34 : vector<16x256xf32>
    %c0_39 = arith.constant 0 : index
    %c2_40 = arith.constant 2 : index
    %c0_41 = arith.constant 0 : index
    %36 = vector.load %arg14[%c0_39, %c2_40, %c0_41] : memref<1x20x128xbf16, #tpu.memory_space<vmem>>, vector<1x16x128xbf16>
    %37 = vector.shape_cast %36 : vector<1x16x128xbf16> to vector<16x128xbf16>
    %c2_42 = arith.constant 2 : index
    %c0_43 = arith.constant 0 : index
    %c0_44 = arith.constant 0 : index
    %38 = vector.load %arg5[%c2_42, %c0_43, %c0_44] : memref<5x128x256xbf16, #tpu.memory_space<vmem>>, vector<1x128x256xbf16>
    %39 = vector.shape_cast %38 : vector<1x128x256xbf16> to vector<128x256xbf16>
    %cst_45 = arith.constant dense<0.000000e+00> : vector<16x256xf32>
    %40 = tpu.matmul %37, %39, %cst_45 {dimension_numbers = #tpu.dot_dimension_numbers<[1], [0], [0], [1], [0, 0, 1, 1], [], []>} : vector<16x128xbf16>, vector<128x256xbf16>, vector<16x256xf32> -> vector<16x256xf32>
    %41 = arith.addf %35, %40 : vector<16x256xf32>
    %c0_46 = arith.constant 0 : index
    %c3 = arith.constant 3 : index
    %c0_47 = arith.constant 0 : index
    %42 = vector.load %arg14[%c0_46, %c3, %c0_47] : memref<1x20x128xbf16, #tpu.memory_space<vmem>>, vector<1x16x128xbf16>
    %43 = vector.shape_cast %42 : vector<1x16x128xbf16> to vector<16x128xbf16>
    %c3_48 = arith.constant 3 : index
    %c0_49 = arith.constant 0 : index
    %c0_50 = arith.constant 0 : index
    %44 = vector.load %arg5[%c3_48, %c0_49, %c0_50] : memref<5x128x256xbf16, #tpu.memory_space<vmem>>, vector<1x128x256xbf16>
    %45 = vector.shape_cast %44 : vector<1x128x256xbf16> to vector<128x256xbf16>
    %cst_51 = arith.constant dense<0.000000e+00> : vector<16x256xf32>
    %46 = tpu.matmul %43, %45, %cst_51 {dimension_numbers = #tpu.dot_dimension_numbers<[1], [0], [0], [1], [0, 0, 1, 1], [], []>} : vector<16x128xbf16>, vector<128x256xbf16>, vector<16x256xf32> -> vector<16x256xf32>
    %47 = arith.addf %41, %46 : vector<16x256xf32>
    %c0_52 = arith.constant 0 : index
    %c4 = arith.constant 4 : index
    %c0_53 = arith.constant 0 : index
    %48 = vector.load %arg14[%c0_52, %c4, %c0_53] : memref<1x20x128xbf16, #tpu.memory_space<vmem>>, vector<1x16x128xbf16>
    %49 = vector.shape_cast %48 : vector<1x16x128xbf16> to vector<16x128xbf16>
    %c4_54 = arith.constant 4 : index
    %c0_55 = arith.constant 0 : index
    %c0_56 = arith.constant 0 : index
    %50 = vector.load %arg5[%c4_54, %c0_55, %c0_56] : memref<5x128x256xbf16, #tpu.memory_space<vmem>>, vector<1x128x256xbf16>
    %51 = vector.shape_cast %50 : vector<1x128x256xbf16> to vector<128x256xbf16>
    %cst_57 = arith.constant dense<0.000000e+00> : vector<16x256xf32>
    %52 = tpu.matmul %49, %51, %cst_57 {dimension_numbers = #tpu.dot_dimension_numbers<[1], [0], [0], [1], [0, 0, 1, 1], [], []>} : vector<16x128xbf16>, vector<128x256xbf16>, vector<16x256xf32> -> vector<16x256xf32>
    %53 = arith.addf %47, %52 : vector<16x256xf32>
    %c0_58 = arith.constant 0 : index
    %c0_59 = arith.constant 0 : index
    %54 = vector.load %arg6[%c0_58, %c0_59] : memref<1x256xf32, #tpu.memory_space<vmem>>, vector<1x256xf32>
    %55 = vector.broadcast %54 : vector<1x256xf32> to vector<16x256xf32>
    %56 = arith.mulf %53, %55 : vector<16x256xf32>
    %c0_60 = arith.constant 0 : index
    %c0_61 = arith.constant 0 : index
    %57 = vector.load %arg7[%c0_60, %c0_61] : memref<1x256xf32, #tpu.memory_space<vmem>>, vector<1x256xf32>
    %58 = vector.broadcast %57 : vector<1x256xf32> to vector<16x256xf32>
    %59 = arith.addf %56, %58 : vector<16x256xf32>
    %cst_62 = arith.constant 0.000000e+00 : f32
    %60 = vector.broadcast %cst_62 : f32 to vector<16x256xf32>
    %61 = arith.maximumf %59, %60 : vector<16x256xf32>
    %62 = vector.shape_cast %61 : vector<16x256xf32> to vector<1x16x256xf32>
    %63 = arith.truncf %62 : vector<1x16x256xf32> to vector<1x16x256xbf16>
    %c0_63 = arith.constant 0 : index
    %c1_64 = arith.constant 1 : index
    %c0_65 = arith.constant 0 : index
    %64 = vector.load %arg15[%c0_63, %c1_64, %c0_65] : memref<1x18x256xbf16, #tpu.memory_space<vmem>>, vector<1x16x256xbf16>
    tpu.vector_store %arg15[%c0_63, %c1_64, %c0_65], %63 {strides = array<i32>} : memref<1x18x256xbf16, #tpu.memory_space<vmem>>, vector<1x16x256xbf16>,
    %cst_66 = arith.constant 0.000000e+00 : f32
    %65 = vector.broadcast %cst_66 : f32 to vector<16x128xf32>
    %c0_67 = arith.constant 0 : index
    %c0_68 = arith.constant 0 : index
    %c0_69 = arith.constant 0 : index
    %66 = vector.load %arg15[%c0_67, %c0_68, %c0_69] : memref<1x18x256xbf16, #tpu.memory_space<vmem>>, vector<1x16x256xbf16>
    %67 = vector.shape_cast %66 : vector<1x16x256xbf16> to vector<16x256xbf16>
    %c0_70 = arith.constant 0 : index
    %c0_71 = arith.constant 0 : index
    %c0_72 = arith.constant 0 : index
    %68 = vector.load %arg8[%c0_70, %c0_71, %c0_72] : memref<3x256x128xbf16, #tpu.memory_space<vmem>>, vector<1x256x128xbf16>
    %69 = vector.shape_cast %68 : vector<1x256x128xbf16> to vector<256x128xbf16>
    %cst_73 = arith.constant dense<0.000000e+00> : vector<16x128xf32>
    %70 = tpu.matmul %67, %69, %cst_73 {dimension_numbers = #tpu.dot_dimension_numbers<[1], [0], [0], [1], [0, 0, 1, 1], [], []>} : vector<16x256xbf16>, vector<256x128xbf16>, vector<16x128xf32> -> vector<16x128xf32>
    %71 = arith.addf %65, %70 : vector<16x128xf32>
    %c0_74 = arith.constant 0 : index
    %c1_75 = arith.constant 1 : index
    %c0_76 = arith.constant 0 : index
    %72 = vector.load %arg15[%c0_74, %c1_75, %c0_76] : memref<1x18x256xbf16, #tpu.memory_space<vmem>>, vector<1x16x256xbf16>
    %73 = vector.shape_cast %72 : vector<1x16x256xbf16> to vector<16x256xbf16>
    %c1_77 = arith.constant 1 : index
    %c0_78 = arith.constant 0 : index
    %c0_79 = arith.constant 0 : index
    %74 = vector.load %arg8[%c1_77, %c0_78, %c0_79] : memref<3x256x128xbf16, #tpu.memory_space<vmem>>, vector<1x256x128xbf16>
    %75 = vector.shape_cast %74 : vector<1x256x128xbf16> to vector<256x128xbf16>
    %cst_80 = arith.constant dense<0.000000e+00> : vector<16x128xf32>
    %76 = tpu.matmul %73, %75, %cst_80 {dimension_numbers = #tpu.dot_dimension_numbers<[1], [0], [0], [1], [0, 0, 1, 1], [], []>} : vector<16x256xbf16>, vector<256x128xbf16>, vector<16x128xf32> -> vector<16x128xf32>
    %77 = arith.addf %71, %76 : vector<16x128xf32>
    %c0_81 = arith.constant 0 : index
    %c2_82 = arith.constant 2 : index
    %c0_83 = arith.constant 0 : index
    %78 = vector.load %arg15[%c0_81, %c2_82, %c0_83] : memref<1x18x256xbf16, #tpu.memory_space<vmem>>, vector<1x16x256xbf16>
    %79 = vector.shape_cast %78 : vector<1x16x256xbf16> to vector<16x256xbf16>
    %c2_84 = arith.constant 2 : index
    %c0_85 = arith.constant 0 : index
    %c0_86 = arith.constant 0 : index
    %80 = vector.load %arg8[%c2_84, %c0_85, %c0_86] : memref<3x256x128xbf16, #tpu.memory_space<vmem>>, vector<1x256x128xbf16>
    %81 = vector.shape_cast %80 : vector<1x256x128xbf16> to vector<256x128xbf16>
    %cst_87 = arith.constant dense<0.000000e+00> : vector<16x128xf32>
    %82 = tpu.matmul %79, %81, %cst_87 {dimension_numbers = #tpu.dot_dimension_numbers<[1], [0], [0], [1], [0, 0, 1, 1], [], []>} : vector<16x256xbf16>, vector<256x128xbf16>, vector<16x128xf32> -> vector<16x128xf32>
    %83 = arith.addf %77, %82 : vector<16x128xf32>
    %c0_88 = arith.constant 0 : index
    %c0_89 = arith.constant 0 : index
    %84 = vector.load %arg9[%c0_88, %c0_89] : memref<1x128xf32, #tpu.memory_space<vmem>>, vector<1x128xf32>
    %85 = vector.broadcast %84 : vector<1x128xf32> to vector<16x128xf32>
    %86 = arith.mulf %83, %85 : vector<16x128xf32>
    %c0_90 = arith.constant 0 : index
    %c0_91 = arith.constant 0 : index
    %87 = vector.load %arg10[%c0_90, %c0_91] : memref<1x128xf32, #tpu.memory_space<vmem>>, vector<1x128xf32>
    %88 = vector.broadcast %87 : vector<1x128xf32> to vector<16x128xf32>
    %89 = arith.addf %86, %88 : vector<16x128xf32>
    %cst_92 = arith.constant 0.000000e+00 : f32
    %90 = vector.broadcast %cst_92 : f32 to vector<16x128xf32>
    %91 = arith.maximumf %89, %90 : vector<16x128xf32>
    %92 = vector.shape_cast %91 : vector<16x128xf32> to vector<1x16x128xf32>
    %cst_93 = arith.constant dense<0.000000e+00> : vector<1x128xf32>
    %93 = vector.multi_reduction <add>, %92, %cst_93 [1] : vector<1x16x128xf32> to vector<1x128xf32>
    %c0_94 = arith.constant 0 : index
    %c0_95 = arith.constant 0 : index
    %94 = vector.load %arg11[%c0_94, %c0_95] : memref<128x3xf32, #tpu.memory_space<vmem>>, vector<128x3xf32>
    %cst_96 = arith.constant dense<0.000000e+00> : vector<1x3xf32>
    %95 = tpu.matmul %93, %94, %cst_96 {dimension_numbers = #tpu.dot_dimension_numbers<[1], [0], [0], [1], [0, 0, 1, 1], [], []>} : vector<1x128xf32>, vector<128x3xf32>, vector<1x3xf32> -> vector<1x3xf32>
    %c0_97 = arith.constant 0 : index
    %c0_98 = arith.constant 0 : index
    %96 = vector.load %arg12[%c0_97, %c0_98] : memref<1x3xf32, #tpu.memory_space<vmem>>, vector<1x3xf32>
    %97 = arith.addf %95, %96 : vector<1x3xf32>
    %98 = vector.shape_cast %97 : vector<1x3xf32> to vector<1x1x3xf32>
    %c0_99 = arith.constant 0 : index
    %c0_100 = arith.constant 0 : index
    %c0_101 = arith.constant 0 : index
    %99 = vector.load %arg13[%c0_99, %c0_100, %c0_101] : memref<1x1x3xf32, #tpu.memory_space<vmem>>, vector<1x1x3xf32>
    tpu.vector_store %arg13[%c0_99, %c0_100, %c0_101], %98 {strides = array<i32>} : memref<1x1x3xf32, #tpu.memory_space<vmem>>, vector<1x1x3xf32>,
    return
  }
  func.func @transform_0(%arg0: i32) -> (i32, i32, i32) {
    %c0_i32 = arith.constant 0 : i32
    %c0_i32_0 = arith.constant 0 : i32
    %c0_i32_1 = arith.constant 0 : i32
    return %arg0, %c0_i32, %c0_i32_0 : i32, i32, i32
  }
  func.func @transform_1(%arg0: i32) -> (i32, i32) {
    %c0_i32 = arith.constant 0 : i32
    %c0_i32_0 = arith.constant 0 : i32
    %c0_i32_1 = arith.constant 0 : i32
    return %c0_i32, %c0_i32_0 : i32, i32
  }
  func.func @transform_2(%arg0: i32) -> (i32, i32) {
    %c0_i32 = arith.constant 0 : i32
    %c0_i32_0 = arith.constant 0 : i32
    %c0_i32_1 = arith.constant 0 : i32
    return %c0_i32, %c0_i32_0 : i32, i32
  }
  func.func @transform_3(%arg0: i32) -> (i32, i32) {
    %c0_i32 = arith.constant 0 : i32
    %c0_i32_0 = arith.constant 0 : i32
    %c0_i32_1 = arith.constant 0 : i32
    return %c0_i32, %c0_i32_0 : i32, i32
  }
  func.func @transform_4(%arg0: i32) -> (i32, i32, i32) {
    %c0_i32 = arith.constant 0 : i32
    %c0_i32_0 = arith.constant 0 : i32
    %c0_i32_1 = arith.constant 0 : i32
    %c0_i32_2 = arith.constant 0 : i32
    return %c0_i32, %c0_i32_0, %c0_i32_1 : i32, i32, i32
  }
  func.func @transform_5(%arg0: i32) -> (i32, i32) {
    %c0_i32 = arith.constant 0 : i32
    %c0_i32_0 = arith.constant 0 : i32
    %c0_i32_1 = arith.constant 0 : i32
    return %c0_i32, %c0_i32_0 : i32, i32
  }
  func.func @transform_6(%arg0: i32) -> (i32, i32) {
    %c0_i32 = arith.constant 0 : i32
    %c0_i32_0 = arith.constant 0 : i32
    %c0_i32_1 = arith.constant 0 : i32
    return %c0_i32, %c0_i32_0 : i32, i32
  }
  func.func @transform_7(%arg0: i32) -> (i32, i32, i32) {
    %c0_i32 = arith.constant 0 : i32
    %c0_i32_0 = arith.constant 0 : i32
    %c0_i32_1 = arith.constant 0 : i32
    %c0_i32_2 = arith.constant 0 : i32
    return %c0_i32, %c0_i32_0, %c0_i32_1 : i32, i32, i32
  }
  func.func @transform_8(%arg0: i32) -> (i32, i32) {
    %c0_i32 = arith.constant 0 : i32
    %c0_i32_0 = arith.constant 0 : i32
    %c0_i32_1 = arith.constant 0 : i32
    return %c0_i32, %c0_i32_0 : i32, i32
  }
  func.func @transform_9(%arg0: i32) -> (i32, i32) {
    %c0_i32 = arith.constant 0 : i32
    %c0_i32_0 = arith.constant 0 : i32
    %c0_i32_1 = arith.constant 0 : i32
    return %c0_i32, %c0_i32_0 : i32, i32
  }
  func.func @transform_10(%arg0: i32) -> (i32, i32) {
    %c0_i32 = arith.constant 0 : i32
    %c0_i32_0 = arith.constant 0 : i32
    %c0_i32_1 = arith.constant 0 : i32
    return %c0_i32, %c0_i32_0 : i32, i32
  }
  func.func @transform_11(%arg0: i32) -> (i32, i32) {
    %c0_i32 = arith.constant 0 : i32
    %c0_i32_0 = arith.constant 0 : i32
    %c0_i32_1 = arith.constant 0 : i32
    return %c0_i32, %c0_i32_0 : i32, i32
  }
  func.func @transform_12(%arg0: i32) -> (i32, i32, i32) {
    %c0_i32 = arith.constant 0 : i32
    %c0_i32_0 = arith.constant 0 : i32
    %c0_i32_1 = arith.constant 0 : i32
    return %arg0, %c0_i32, %c0_i32_0 : i32, i32, i32
  }
}

</mosaic_0001>

<llo_original>
// kernel: tpu_custom_call.1
$region0: #{tpu_custom_call.1}
  #allocation0 [shape = 'u32[]', space=smem, size = 0x4, offset = 0x4, fixed_abs, tag = 'smem constant byte address 0x4 - core index']
  #allocation1 [shape = 'u32[144,128]{1,0:T(1,128)}', space=vmem, size = 0x12000, scoped, tag = 'internal scratch']
  #allocation2 [shape = 'bf16[1,20,128]{2,1,0:T(8,128)(2,1)}', space=vmem, size = 0x1800, scoped, tag = 'scratch operand']
  #allocation3 [shape = 'bf16[1,18,256]{2,1,0:T(8,128)(2,1)}', space=vmem, size = 0x3000, scoped, tag = 'scratch operand']
  %s0 = inlined_call_operand.vmem [shape: bf16[2,16,128], index: 0, kind: input, shape index: {}]
  %s1 = inlined_call_operand.vmem [shape: bf16[128,128], index: 1, kind: input, shape index: {}]
  %s2 = inlined_call_operand.vmem [shape: f32[1,128], index: 2, kind: input, shape index: {}]
  %s3 = inlined_call_operand.vmem [shape: f32[1,128], index: 3, kind: input, shape index: {}]
  %s4 = inlined_call_operand.hbm [shape: bf16[5,128,256], index: 4, kind: input, shape index: {}]
  %s5 = inlined_call_operand.vmem [shape: f32[1,256], index: 5, kind: input, shape index: {}]
  %s6 = inlined_call_operand.vmem [shape: f32[1,256], index: 6, kind: input, shape index: {}]
  %s7 = inlined_call_operand.hbm [shape: bf16[3,256,128], index: 7, kind: input, shape index: {}]
  %s8 = inlined_call_operand.vmem [shape: f32[1,128], index: 8, kind: input, shape index: {}]
  %s9 = inlined_call_operand.vmem [shape: f32[1,128], index: 9, kind: input, shape index: {}]
  %s10 = inlined_call_operand.vmem [shape: f32[128,3], index: 10, kind: input, shape index: {}]
  %s11 = inlined_call_operand.vmem [shape: f32[1,3], index: 11, kind: input, shape index: {}]
  %s12 = inlined_call_operand.hbm [shape: f32[2,1,3], index: 12, kind: output, shape index: {}]
  %s13 = sld [smem:[#allocation0]]
  $region89: #{tpu_custom_call.1} parent=0
    _
  %s15 = ssub.s32 1, %s13
  %s16 = scalar_select 0, %s15, %s13
  $region1: #{tpu_custom_call.1} parent=0
    #allocation4 [shape = 'u8[327680]{0}', space=vmem, size = 0x50000, scoped, tag = 'input window, operand 4, single buffered']
    #allocation5 [shape = 's32[2]{0}', space=sflag, size = 0x8, scoped, tag = 'scoped memory for tpu_custom_call.1']
    #allocation6 [shape = 's32[2]{0}', space=sflag, size = 0x8, scoped, tag = 'scoped memory for tpu_custom_call.1']
    #allocation7 [shape = 'u8[196608]{0}', space=vmem, size = 0x30000, scoped, tag = 'input window, operand 7, single buffered']
    #allocation8 [shape = 's32[1]{0}', space=sflag, size = 0x4, scoped, tag = 'scoped memory for tpu_custom_call.1']
    #allocation9 [shape = 'u8[1024]{0}', space=vmem, size = 0x400, scoped, tag = 'output window, operand 0']
    %17 = vsyncpa [#allocation5], 0
    %18 = vsyncpa [#allocation8], 0
    %19 = vsyncpa [#allocation6], 0
    %s20 = scalar_lea.sflag [#allocation6], 1
    %21 = vsyncpa %s20, 0
    loop: start=0, step=1, limit=4
    $region2: #{tpu_custom_call.1} parent=1 // loop_pre_header
      _
    $region3: #{tpu_custom_call.1} parent=1 // loop_header
      %s23 = sphi 0, %s27
      %p24 = scmp.ge.s32.totalorder %s23, 4
      %s33 = sphi 0, %s35
      %s36 = sphi 0, %s33
      %s37 = sphi 0, %s36
      %s53 = sphi 0, %s37
      %s57 = sphi 0, %s57
      %s59 = sphi 0, %s57
      %s60 = sphi 0, %s59
      %s74 = sphi 0, %s60
      %s78 = sphi 0, %s78
      %s80 = sphi 0, %s78
      %s81 = sphi 0, %s80
      %s95 = sphi 0, %s81
      %s99 = sphi 0, %s99
      %s101 = sphi 0, %s99
      %s102 = sphi 0, %s101
      %s116 = sphi 0, %s102
      %s120 = sphi 0, %s120
      %s122 = sphi 0, %s120
      %s123 = sphi 0, %s122
      %s137 = sphi 0, %s123
      %s141 = sphi 0, %s141
      %s143 = sphi 0, %s141
      %s144 = sphi 0, %s143
      %s158 = sphi 0, %s144
      %s162 = sphi 0, %s162
      %s164 = sphi 0, %s162
      %s165 = sphi 0, %s164
      %s179 = sphi 0, %s165
      %s183 = sphi 0, %s183
      %s185 = sphi 0, %s183
      %s186 = sphi 0, %s185
      %s200 = sphi 0, %s186
      %s204 = sphi 0, %s204
      %s206 = sphi 0, %s204
      %s207 = sphi 0, %s206
      %s221 = sphi 0, %s207
      %s225 = sphi 0, %s225
      %s227 = sphi 0, %s225
      %s228 = sphi 0, %s227
      %s242 = sphi 0, %s228
      %s246 = sphi 0, %s246
      %s248 = sphi 0, %s246
      %s249 = sphi 0, %s248
      %s263 = sphi 0, %s249
      %s267 = sphi 0, %s267
      %s269 = sphi 0, %s267
      %s270 = sphi 0, %s269
      %s284 = sphi 0, %s270
      %s290 = sphi 0, %s292
      %s293 = sphi 0, %s290
      %s294 = sphi 0, %s293
      %s310 = sphi 0, %s294
    $region4: #{tpu_custom_call.1} parent=1 // loop_header_branch
      %26 = sbr.rel (%p24) target = $region8
    $region5: #{tpu_custom_call.1} parent=1 // loop_body
      %s28 = ssub.s32 %s23, 1
      %s29 = ssub.s32 %s23, 2
      %s30 = sadd.s32 %s23, 1
      %s31 = ssub.s32 %s23, %s30
      %p32 = scmp.eq.s32.totalorder %s31, 0
      %s34 = sadd.s32 %s33, 1
      %s35 = scalar_select %p32, %s33, %s34
      %p38 = pneg %p32
      %p39 = scmp.eq.s32.totalorder %s23, 1
      %p40 = por %p38, %p39
      %p41 = scmp.ne.s32.totalorder %s33, %s36
      %p42 = scmp.eq.s32.totalorder %s23, 0
      %p43 = por %p41, %p42
      %p44 = scmp.ne.s32.totalorder %s33, %s36
      %p45 = scmp.eq.s32.totalorder %s28, 1
      %p46 = por %p44, %p45
      %p47 = scmp.ne.s32.totalorder %s36, %s37
      %p48 = scmp.eq.s32.totalorder %s28, 0
      %p49 = por %p47, %p48
      %p50 = scmp.ne.s32.totalorder %s36, %s37
      %p51 = scmp.eq.s32.totalorder %s29, 1
      %p52 = por %p50, %p51
      %p54 = scmp.ne.s32.totalorder %s37, %s53
      %p55 = scmp.eq.s32.totalorder %s29, 0
      %p56 = por %p54, %p55
      %s58 = sadd.s32 %s57, 1
      %p61 = scmp.eq.s32.totalorder %s23, 1
      %p62 = scmp.ne.s32.totalorder %s57, %s59
      %p63 = scmp.eq.s32.totalorder %s23, 0
      %p64 = por %p62, %p63
      %p65 = scmp.ne.s32.totalorder %s57, %s59
      %p66 = scmp.eq.s32.totalorder %s28, 1
      %p67 = por %p65, %p66
      %p68 = scmp.ne.s32.totalorder %s59, %s60
      %p69 = scmp.eq.s32.totalorder %s28, 0
      %p70 = por %p68, %p69
      %p71 = scmp.ne.s32.totalorder %s59, %s60
      %p72 = scmp.eq.s32.totalorder %s29, 1
      %p73 = por %p71, %p72
      %p75 = scmp.ne.s32.totalorder %s60, %s74
      %p76 = scmp.eq.s32.totalorder %s29, 0
      %p77 = por %p75, %p76
      %s79 = sadd.s32 %s78, 1
      %p82 = scmp.eq.s32.totalorder %s23, 1
      %p83 = scmp.ne.s32.totalorder %s78, %s80
      %p84 = scmp.eq.s32.totalorder %s23, 0
      %p85 = por %p83, %p84
      %p86 = scmp.ne.s32.totalorder %s78, %s80
      %p87 = scmp.eq.s32.totalorder %s28, 1
      %p88 = por %p86, %p87
      %p89 = scmp.ne.s32.totalorder %s80, %s81
      %p90 = scmp.eq.s32.totalorder %s28, 0
      %p91 = por %p89, %p90
      %p92 = scmp.ne.s32.totalorder %s80, %s81
      %p93 = scmp.eq.s32.totalorder %s29, 1
      %p94 = por %p92, %p93
      %p96 = scmp.ne.s32.totalorder %s81, %s95
      %p97 = scmp.eq.s32.totalorder %s29, 0
      %p98 = por %p96, %p97
      %s100 = sadd.s32 %s99, 1
      %p103 = scmp.eq.s32.totalorder %s23, 1
      %p104 = scmp.ne.s32.totalorder %s99, %s101
      %p105 = scmp.eq.s32.totalorder %s23, 0
      %p106 = por %p104, %p105
      %p107 = scmp.ne.s32.totalorder %s99, %s101
      %p108 = scmp.eq.s32.totalorder %s28, 1
      %p109 = por %p107, %p108
      %p110 = scmp.ne.s32.totalorder %s101, %s102
      %p111 = scmp.eq.s32.totalorder %s28, 0
      %p112 = por %p110, %p111
      %p113 = scmp.ne.s32.totalorder %s101, %s102
      %p114 = scmp.eq.s32.totalorder %s29, 1
      %p115 = por %p113, %p114
      %p117 = scmp.ne.s32.totalorder %s102, %s116
      %p118 = scmp.eq.s32.totalorder %s29, 0
      %p119 = por %p117, %p118
      %s121 = sadd.s32 %s120, 1
      %p124 = scmp.eq.s32.totalorder %s23, 1
      %p125 = scmp.ne.s32.totalorder %s120, %s122
      %p126 = scmp.eq.s32.totalorder %s23, 0
      %p127 = por %p125, %p126
      %p128 = scmp.ne.s32.totalorder %s120, %s122
      %p129 = scmp.eq.s32.totalorder %s28, 1
      %p130 = por %p128, %p129
      %p131 = scmp.ne.s32.totalorder %s122, %s123
      %p132 = scmp.eq.s32.totalorder %s28, 0
      %p133 = por %p131, %p132
      %p134 = scmp.ne.s32.totalorder %s122, %s123
      %p135 = scmp.eq.s32.totalorder %s29, 1
      %p136 = por %p134, %p135
      %p138 = scmp.ne.s32.totalorder %s123, %s137
      %p139 = scmp.eq.s32.totalorder %s29, 0
      %p140 = por %p138, %p139
      %s142 = sadd.s32 %s141, 1
      %p145 = scmp.eq.s32.totalorder %s23, 1
      %p146 = scmp.ne.s32.totalorder %s141, %s143
      %p147 = scmp.eq.s32.totalorder %s23, 0
      %p148 = por %p146, %p147
      %p149 = scmp.ne.s32.totalorder %s141, %s143
      %p150 = scmp.eq.s32.totalorder %s28, 1
      %p151 = por %p149, %p150
      %p152 = scmp.ne.s32.totalorder %s143, %s144
      %p153 = scmp.eq.s32.totalorder %s28, 0
      %p154 = por %p152, %p153
      %p155 = scmp.ne.s32.totalorder %s143, %s144
      %p156 = scmp.eq.s32.totalorder %s29, 1
      %p157 = por %p155, %p156
      %p159 = scmp.ne.s32.totalorder %s144, %s158
      %p160 = scmp.eq.s32.totalorder %s29, 0
      %p161 = por %p159, %p160
      %s163 = sadd.s32 %s162, 1
      %p166 = scmp.eq.s32.totalorder %s23, 1
      %p167 = scmp.ne.s32.totalorder %s162, %s164
      %p168 = scmp.eq.s32.totalorder %s23, 0
      %p169 = por %p167, %p168
      %p170 = scmp.ne.s32.totalorder %s162, %s164
      %p171 = scmp.eq.s32.totalorder %s28, 1
      %p172 = por %p170, %p171
      %p173 = scmp.ne.s32.totalorder %s164, %s165
      %p174 = scmp.eq.s32.totalorder %s28, 0
      %p175 = por %p173, %p174
      %p176 = scmp.ne.s32.totalorder %s164, %s165
      %p177 = scmp.eq.s32.totalorder %s29, 1
      %p178 = por %p176, %p177
      %p180 = scmp.ne.s32.totalorder %s165, %s179
      %p181 = scmp.eq.s32.totalorder %s29, 0
      %p182 = por %p180, %p181
      %s184 = sadd.s32 %s183, 1
      %p187 = scmp.eq.s32.totalorder %s23, 1
      %p188 = scmp.ne.s32.totalorder %s183, %s185
      %p189 = scmp.eq.s32.totalorder %s23, 0
      %p190 = por %p188, %p189
      %p191 = scmp.ne.s32.totalorder %s183, %s185
      %p192 = scmp.eq.s32.totalorder %s28, 1
      %p193 = por %p191, %p192
      %p194 = scmp.ne.s32.totalorder %s185, %s186
      %p195 = scmp.eq.s32.totalorder %s28, 0
      %p196 = por %p194, %p195
      %p197 = scmp.ne.s32.totalorder %s185, %s186
      %p198 = scmp.eq.s32.totalorder %s29, 1
      %p199 = por %p197, %p198
      %p201 = scmp.ne.s32.totalorder %s186, %s200
      %p202 = scmp.eq.s32.totalorder %s29, 0
      %p203 = por %p201, %p202
      %s205 = sadd.s32 %s204, 1
      %p208 = scmp.eq.s32.totalorder %s23, 1
      %p209 = scmp.ne.s32.totalorder %s204, %s206
      %p210 = scmp.eq.s32.totalorder %s23, 0
      %p211 = por %p209, %p210
      %p212 = scmp.ne.s32.totalorder %s204, %s206
      %p213 = scmp.eq.s32.totalorder %s28, 1
      %p214 = por %p212, %p213
      %p215 = scmp.ne.s32.totalorder %s206, %s207
      %p216 = scmp.eq.s32.totalorder %s28, 0
      %p217 = por %p215, %p216
      %p218 = scmp.ne.s32.totalorder %s206, %s207
      %p219 = scmp.eq.s32.totalorder %s29, 1
      %p220 = por %p218, %p219
      %p222 = scmp.ne.s32.totalorder %s207, %s221
      %p223 = scmp.eq.s32.totalorder %s29, 0
      %p224 = por %p222, %p223
      %s226 = sadd.s32 %s225, 1
      %p229 = scmp.eq.s32.totalorder %s23, 1
      %p230 = scmp.ne.s32.totalorder %s225, %s227
      %p231 = scmp.eq.s32.totalorder %s23, 0
      %p232 = por %p230, %p231
      %p233 = scmp.ne.s32.totalorder %s225, %s227
      %p234 = scmp.eq.s32.totalorder %s28, 1
      %p235 = por %p233, %p234
      %p236 = scmp.ne.s32.totalorder %s227, %s228
      %p237 = scmp.eq.s32.totalorder %s28, 0
      %p238 = por %p236, %p237
      %p239 = scmp.ne.s32.totalorder %s227, %s228
      %p240 = scmp.eq.s32.totalorder %s29, 1
      %p241 = por %p239, %p240
      %p243 = scmp.ne.s32.totalorder %s228, %s242
      %p244 = scmp.eq.s32.totalorder %s29, 0
      %p245 = por %p243, %p244
      %s247 = sadd.s32 %s246, 1
      %p250 = scmp.eq.s32.totalorder %s23, 1
      %p251 = scmp.ne.s32.totalorder %s246, %s248
      %p252 = scmp.eq.s32.totalorder %s23, 0
      %p253 = por %p251, %p252
      %p254 = scmp.ne.s32.totalorder %s246, %s248
      %p255 = scmp.eq.s32.totalorder %s28, 1
      %p256 = por %p254, %p255
      %p257 = scmp.ne.s32.totalorder %s248, %s249
      %p258 = scmp.eq.s32.totalorder %s28, 0
      %p259 = por %p257, %p258
      %p260 = scmp.ne.s32.totalorder %s248, %s249
      %p261 = scmp.eq.s32.totalorder %s29, 1
      %p262 = por %p260, %p261
      %p264 = scmp.ne.s32.totalorder %s249, %s263
      %p265 = scmp.eq.s32.totalorder %s29, 0
      %p266 = por %p264, %p265
      %s268 = sadd.s32 %s267, 1
      %p271 = scmp.eq.s32.totalorder %s23, 1
      %p272 = scmp.ne.s32.totalorder %s267, %s269
      %p273 = scmp.eq.s32.totalorder %s23, 0
      %p274 = por %p272, %p273
      %p275 = scmp.ne.s32.totalorder %s267, %s269
      %p276 = scmp.eq.s32.totalorder %s28, 1
      %p277 = por %p275, %p276
      %p278 = scmp.ne.s32.totalorder %s269, %s270
      %p279 = scmp.eq.s32.totalorder %s28, 0
      %p280 = por %p278, %p279
      %p281 = scmp.ne.s32.totalorder %s269, %s270
      %p282 = scmp.eq.s32.totalorder %s29, 1
      %p283 = por %p281, %p282
      %p285 = scmp.ne.s32.totalorder %s270, %s284
      %p286 = scmp.eq.s32.totalorder %s29, 0
      %p287 = por %p285, %p286
      %s288 = ssub.s32 %s23, %s30
      %p289 = scmp.eq.s32.totalorder %s288, 0
      %s291 = sadd.s32 %s290, 1
      %s292 = scalar_select %p289, %s290, %s291
      %p295 = pneg %p289
      %p296 = scmp.eq.s32.totalorder %s23, 1
      %p297 = por %p295, %p296
      %p298 = scmp.ne.s32.totalorder %s290, %s293
      %p299 = scmp.eq.s32.totalorder %s23, 0
      %p300 = por %p298, %p299
      %p301 = scmp.ne.s32.totalorder %s290, %s293
      %p302 = scmp.eq.s32.totalorder %s28, 1
      %p303 = por %p301, %p302
      %p304 = scmp.ne.s32.totalorder %s293, %s294
      %p305 = scmp.eq.s32.totalorder %s28, 0
      %p306 = por %p304, %p305
      %p307 = scmp.ne.s32.totalorder %s293, %s294
      %p308 = scmp.eq.s32.totalorder %s29, 1
      %p309 = por %p307, %p308
      %p311 = scmp.ne.s32.totalorder %s294, %s310
      %p312 = scmp.eq.s32.totalorder %s29, 0
      %p313 = por %p311, %p312
      %p314 = scmp.le.s32.totalorder 1, %s23
      %p315 = scmp.lt.s32.totalorder %s23, 3
      %p316 = pnand %p314, %p315
      %p317 = pneg %p316
      // Predicated region
      $region9: #{tpu_custom_call.1} parent=5 // pred_check
        _
      $region10: #{tpu_custom_call.1} parent=5 // pred_check_branch
        %319 = sbr.rel (%p316) target = $region12
      $region11: #{tpu_custom_call.1} parent=5 // pred_region
        %s320 = ssub.s32 %s23, 1
        // Predicated region
        $region13: #{tpu_custom_call.1} parent=11 // pred_check
          %p321 = pneg %p70
        $region14: #{tpu_custom_call.1} parent=11 // pred_check_branch
          %323 = sbr.rel (%p321) target = $region16
        $region15: #{tpu_custom_call.1} parent=11 // pred_region
          _
        $region16: #{tpu_custom_call.1} parent=11 // pred_fallthru
          _
        // Predicated region
        $region17: #{tpu_custom_call.1} parent=11 // pred_check
          %p324 = pneg %p91
        $region18: #{tpu_custom_call.1} parent=11 // pred_check_branch
          %326 = sbr.rel (%p324) target = $region20
        $region19: #{tpu_custom_call.1} parent=11 // pred_region
          _
        $region20: #{tpu_custom_call.1} parent=11 // pred_fallthru
          _
        // Predicated region
        $region21: #{tpu_custom_call.1} parent=11 // pred_check
          %p327 = pneg %p112
        $region22: #{tpu_custom_call.1} parent=11 // pred_check_branch
          %329 = sbr.rel (%p327) target = $region24
        $region23: #{tpu_custom_call.1} parent=11 // pred_region
          _
        $region24: #{tpu_custom_call.1} parent=11 // pred_fallthru
          _
        // Predicated region
        $region25: #{tpu_custom_call.1} parent=11 // pred_check
          %p330 = pneg %p133
        $region26: #{tpu_custom_call.1} parent=11 // pred_check_branch
          %332 = sbr.rel (%p330) target = $region28
        $region27: #{tpu_custom_call.1} parent=11 // pred_region
          %s334 = ssub.s32 10240, 10240
          %335 = vsyncadd [#allocation5], %s334
          %s336 = sshll.u32 [#allocation4], 4
          %s337 = int_to_ptr.vmem [resolvable:$true] %s336
          %342 = dma.hbm_to_vmem [thread:$0]  %s4, 10240, %s337, [#allocation5], 128, 128, 8
        $region28: #{tpu_custom_call.1} parent=11 // pred_fallthru
          _
        // Predicated region
        $region29: #{tpu_custom_call.1} parent=11 // pred_check
          %p343 = pneg %p154
        $region30: #{tpu_custom_call.1} parent=11 // pred_check_branch
          %345 = sbr.rel (%p343) target = $region32
        $region31: #{tpu_custom_call.1} parent=11 // pred_region
          _
        $region32: #{tpu_custom_call.1} parent=11 // pred_fallthru
          _
        // Predicated region
        $region33: #{tpu_custom_call.1} parent=11 // pred_check
          %p346 = pneg %p175
        $region34: #{tpu_custom_call.1} parent=11 // pred_check_branch
          %348 = sbr.rel (%p346) target = $region36
        $region35: #{tpu_custom_call.1} parent=11 // pred_region
          _
        $region36: #{tpu_custom_call.1} parent=11 // pred_fallthru
          _
        // Predicated region
        $region37: #{tpu_custom_call.1} parent=11 // pred_check
          %p349 = pneg %p196
        $region38: #{tpu_custom_call.1} parent=11 // pred_check_branch
          %351 = sbr.rel (%p349) target = $region40
        $region39: #{tpu_custom_call.1} parent=11 // pred_region
          %s353 = ssub.s32 6144, 6144
          %354 = vsyncadd [#allocation8], %s353
          %s355 = sshll.u32 [#allocation7], 4
          %s356 = int_to_ptr.vmem [resolvable:$true] %s355
          %361 = dma.hbm_to_vmem [thread:$0]  %s7, 6144, %s356, [#allocation8], 64, 64, 4
        $region40: #{tpu_custom_call.1} parent=11 // pred_fallthru
          _
        // Predicated region
        $region41: #{tpu_custom_call.1} parent=11 // pred_check
          %p362 = pneg %p217
        $region42: #{tpu_custom_call.1} parent=11 // pred_check_branch
          %364 = sbr.rel (%p362) target = $region44
        $region43: #{tpu_custom_call.1} parent=11 // pred_region
          _
        $region44: #{tpu_custom_call.1} parent=11 // pred_fallthru
          _
        // Predicated region
        $region45: #{tpu_custom_call.1} parent=11 // pred_check
          %p365 = pneg %p238
        $region46: #{tpu_custom_call.1} parent=11 // pred_check_branch
          %367 = sbr.rel (%p365) target = $region48
        $region47: #{tpu_custom_call.1} parent=11 // pred_region
          _
        $region48: #{tpu_custom_call.1} parent=11 // pred_fallthru
          _
        // Predicated region
        $region49: #{tpu_custom_call.1} parent=11 // pred_check
          %p368 = pneg %p259
        $region50: #{tpu_custom_call.1} parent=11 // pred_check_branch
          %370 = sbr.rel (%p368) target = $region52
        $region51: #{tpu_custom_call.1} parent=11 // pred_region
          _
        $region52: #{tpu_custom_call.1} parent=11 // pred_fallthru
          _
        // Predicated region
        $region53: #{tpu_custom_call.1} parent=11 // pred_check
          %p371 = pneg %p280
        $region54: #{tpu_custom_call.1} parent=11 // pred_check_branch
          %373 = sbr.rel (%p371) target = $region56
        $region55: #{tpu_custom_call.1} parent=11 // pred_region
          _
        $region56: #{tpu_custom_call.1} parent=11 // pred_fallthru
          _
      $region12: #{tpu_custom_call.1} parent=5 // pred_fallthru
        _
      %p374 = scmp.lt.s32.totalorder %s23, 2
      // Predicated region
      $region57: #{tpu_custom_call.1} parent=5 // pred_check
        %p375 = pneg %p374
      $region58: #{tpu_custom_call.1} parent=5 // pred_check_branch
        %377 = sbr.rel (%p375) target = $region60
      $region59: #{tpu_custom_call.1} parent=5 // pred_region
        // Predicated region
        $region61: #{tpu_custom_call.1} parent=59 // pred_check
          %p378 = pneg %p43
        $region62: #{tpu_custom_call.1} parent=59 // pred_check_branch
          %380 = sbr.rel (%p378) target = $region64
        $region63: #{tpu_custom_call.1} parent=59 // pred_region
          %p381 = scmp.lt.s32.totalorder %s23, 1
          %s382 = scalar_select %p381, %s23, 1
          %s383 = smul.addr %s382, 2
          %s384 = smul.addr %s383, 4
          %s385 = scalar_lea.vmem %s0, %s384
        $region64: #{tpu_custom_call.1} parent=59 // pred_fallthru
          _
      $region60: #{tpu_custom_call.1} parent=5 // pred_fallthru
        _
      %p386 = scmp.le.s32.totalorder 1, %s23
      %p387 = scmp.lt.s32.totalorder %s23, 3
      %p388 = pnand %p386, %p387
      %p389 = pneg %p388
      // Predicated region
      $region65: #{tpu_custom_call.1} parent=5 // pred_check
        _
      $region66: #{tpu_custom_call.1} parent=5 // pred_check_branch
        %391 = sbr.rel (%p388) target = $region68
      $region67: #{tpu_custom_call.1} parent=5 // pred_region
        %s392 = ssub.s32 %s23, 1
        // Predicated region
        $region69: #{tpu_custom_call.1} parent=67 // pred_check
          %p393 = pneg %p133
        $region70: #{tpu_custom_call.1} parent=67 // pred_check_branch
          %395 = sbr.rel (%p393) target = $region72
        $region71: #{tpu_custom_call.1} parent=67 // pred_region
          %396 = dma.done [#allocation5], 10240
        $region72: #{tpu_custom_call.1} parent=67 // pred_fallthru
          _
        // Predicated region
        $region73: #{tpu_custom_call.1} parent=67 // pred_check
          %p397 = pneg %p196
        $region74: #{tpu_custom_call.1} parent=67 // pred_check_branch
          %399 = sbr.rel (%p397) target = $region76
        $region75: #{tpu_custom_call.1} parent=67 // pred_region
          %400 = dma.done [#allocation8], 6144
        $region76: #{tpu_custom_call.1} parent=67 // pred_fallthru
          _
        %p401 = scmp.lt.s32.totalorder %s28, 1
        %s402 = scalar_select %p401, %s28, 1
        %s403 = smul.addr %s402, 2
        %s404 = smul.addr %s403, 4
        %s405 = scalar_lea.vmem %s0, %s404
        %p406 = pneg %p49
        %p407 = pneg %p46
        %p408 = pneg %p70
        %p409 = pneg %p67
        %p410 = pneg %p91
        %p411 = pneg %p88
        %p412 = pneg %p112
        %p413 = pneg %p109
        %p414 = pneg %p133
        %p415 = pneg %p130
        %p416 = pneg %p154
        %p417 = pneg %p151
        %p418 = pneg %p175
        %p419 = pneg %p172
        %p420 = pneg %p196
        %p421 = pneg %p193
        %p422 = pneg %p217
        %p423 = pneg %p214
        %p424 = pneg %p238
        %p425 = pneg %p235
        %p426 = pneg %p259
        %p427 = pneg %p256
        %p428 = pneg %p280
        %p429 = pneg %p277
        %p430 = pneg %p306
        %p431 = pneg %p303
        %s432 = sand.u32 %s293, 1
        %s433 = scalar_lea.sflag [#allocation6], %s432
        %s434 = sand.u32 %s293, 1
        %s435 = scalar_lea.vmem [#allocation9], %s434
        %p436 = scmp.lt.s32.totalorder %s28, 1
        %s437 = scalar_select %p436, %s28, 1
        %s438 = smul.addr %s437, 2
        %s439 = smul.addr %s438, 4
        %s440 = scalar_lea.vmem %s0, %s439
        %442 = vst [vmem:[#allocation2] sm:$0x1] 0
        %443 = vst [vmem:[#allocation2 + $0x8] sm:$0x2] 0
        %vm444 = vcmask 1040384
        %vm445 = vsmask.f32 256
        %vm446 = vmand %vm444, %vm445
        %vm447 = vcmask 1044484
        %vm448 = vsmask.f32 4352
        %vm449 = vmand %vm447, %vm448
        %vm450 = vmor %vm449, %vm446
        %v451 = vld [vmem:[#allocation3] sm:$0x11]
        %v452 = vsel %vm450, 0, %v451
        %453 = vst [vmem:[#allocation3] sm:$0x11] %v452
        %vm454 = vsmask.f32 7938
        %vm455 = vmand %vm444, %vm454
        %vm456 = vsmask.f32 7954
        %vm457 = vmand %vm447, %vm456
        %vm458 = vmor %vm457, %vm455
        %v459 = vld [vmem:[#allocation3 + $0x10] sm:$0x11]
        %v460 = vsel %vm458, 0, %v459
        %461 = vst [vmem:[#allocation3 + $0x10] sm:$0x11] %v460
        %v462 = vld [vmem:[%s440] sm:$0xf]
        %v463 = vld [vmem:[%s440 + $0x4] sm:$0xf]
        %v464 = vld [vmem:[%s1] sm:$0xf]
        %v465 = vld [vmem:[%s1 + $0x4] sm:$0xf]
        %v466 = vld [vmem:[%s1 + $0x8] sm:$0xf]
        %v467 = vld [vmem:[%s1 + $0xc] sm:$0xf]
        %v468 = vld [vmem:[%s1 + $0x10] sm:$0xf]
        %v469 = vld [vmem:[%s1 + $0x14] sm:$0xf]
        %v470 = vld [vmem:[%s1 + $0x18] sm:$0xf]
        %v471 = vld [vmem:[%s1 + $0x1c] sm:$0xf]
        %v472 = vld [vmem:[%s1 + $0x20] sm:$0xf]
        %v473 = vld [vmem:[%s1 + $0x24] sm:$0xf]
        %v474 = vld [vmem:[%s1 + $0x28] sm:$0xf]
        %v475 = vld [vmem:[%s1 + $0x2c] sm:$0xf]
        %v476 = vld [vmem:[%s1 + $0x30] sm:$0xf]
        %v477 = vld [vmem:[%s1 + $0x34] sm:$0xf]
        %v478 = vld [vmem:[%s1 + $0x38] sm:$0xf]
        %v479 = vld [vmem:[%s1 + $0x3c] sm:$0xf]
        %v482 = vunpack.c.l.b16 %v462
        %v483 = vunpack.c.l.b16 %v463
        %v484 = vpack.c.b16 %v483, %v482
        %v502 = vunpack.c.l.b16 %v464
        %v503 = vunpack.c.l.b16 %v465
        %v504 = vunpack.c.l.b16 %v466
        %v505 = vunpack.c.l.b16 %v467
        %v506 = vunpack.c.l.b16 %v468
        %v507 = vunpack.c.l.b16 %v469
        %v508 = vunpack.c.l.b16 %v470
        %v509 = vunpack.c.l.b16 %v471
        %v510 = vunpack.c.l.b16 %v472
        %v511 = vunpack.c.l.b16 %v473
        %v512 = vunpack.c.l.b16 %v474
        %v513 = vunpack.c.l.b16 %v475
        %v514 = vunpack.c.l.b16 %v476
        %v515 = vunpack.c.l.b16 %v477
        %v516 = vunpack.c.l.b16 %v478
        %v517 = vunpack.c.l.b16 %v479
        %v518 = vpack.c.b16 %v503, %v502
        %v519 = vpack.c.b16 %v505, %v504
        %v520 = vpack.c.b16 %v507, %v506
        %v521 = vpack.c.b16 %v509, %v508
        %v522 = vpack.c.b16 %v511, %v510
        %v523 = vpack.c.b16 %v513, %v512
        %v524 = vpack.c.b16 %v515, %v514
        %v525 = vpack.c.b16 %v517, %v516
        %534 = vmatprep.subr.bf16.mxu0 0
        %535 = vmatpush1.bf16.msra.mxu0 %v518
        %536 = vmatprep.subr.bf16.mxu0 0
        %537 = vmatpush1.bf16.msra.mxu0 %v519
        %538 = vmatprep.subr.bf16.mxu0 0
        %539 = vmatpush1.bf16.msra.mxu0 %v520
        %540 = vmatprep.subr.bf16.mxu0 0
        %541 = vmatpush1.bf16.msra.mxu0 %v521
        %542 = vmatprep.subr.bf16.mxu0 0
        %543 = vmatpush1.bf16.msra.mxu0 %v522
        %544 = vmatprep.subr.bf16.mxu0 0
        %545 = vmatpush1.bf16.msra.mxu0 %v523
        %546 = vmatprep.subr.bf16.mxu0 0
        %547 = vmatpush1.bf16.msra.mxu0 %v524
        %548 = vmatprep.subr.bf16.mxu0 0
        %549 = vmatpush1.bf16.msra.mxu0 %v525
        %550 = vmatprep.subr.bf16.mxu0 0
        %551 = vmatpush1.bf16.msra.mxu0 0
        %552 = vmatprep.subr.bf16.mxu0 0
        %553 = vmatpush1.bf16.msra.mxu0 0
        %554 = vmatprep.subr.bf16.mxu0 0
        %555 = vmatpush1.bf16.msra.mxu0 0
        %556 = vmatprep.subr.bf16.mxu0 0
        %557 = vmatpush1.bf16.msra.mxu0 0
        %558 = vmatprep.subr.bf16.mxu0 0
        %559 = vmatpush1.bf16.msra.mxu0 0
        %560 = vmatprep.subr.bf16.mxu0 0
        %561 = vmatpush1.bf16.msra.mxu0 0
        %562 = vmatprep.subr.bf16.mxu0 0
        %563 = vmatpush1.bf16.msra.mxu0 0
        %564 = vmatprep.subr.bf16.mxu0 0
        %565 = vmatpush1.bf16.msra.mxu0 0
        %566 = vmatprep.mubr.bf16.mxu0 0
        %567 = vmatmul.mubr.bf16.gmra.mrb[0].mxu0 %v484
        %v568 = vpop.f32.mrb[0].mxu0
        %v569 = vadd.f32 0.0, %v568
        %v570 = vpop.f32.mrb[0].mxu0
        %v571 = vpop.f32.mrb[0].mxu0
        %v572 = vadd.f32 0.0, %v571
        %v573 = vpop.f32.mrb[0].mxu0
        %574 = vdwg.mxu0
        %v575 = vld [vmem:[%s2] sm:$0x1]
        %v577 = vlaneseq
        %v578 = vshrl.u32 %v577, 7
        %v579 = vsub.s32 0, %v578
        %v580 = vrot.slane %v575, %v579
        %v582 = vmul.f32 %v569, %v580
        %v583 = vmul.f32 %v572, %v580
        %v584 = vld [vmem:[%s3] sm:$0x1]
        %v586 = vlaneseq
        %v587 = vshrl.u32 %v586, 7
        %v588 = vsub.s32 0, %v587
        %v589 = vrot.slane %v584, %v588
        %v591 = vadd.f32 %v582, %v589
        %v592 = vadd.f32 %v583, %v589
        %v593 = vmax.f32 %v591, 0.0
        %v594 = vmax.f32 %v592, 0.0
        %v595 = vpack.c.bf16 %v594, %v593
        %v597 = vunpack.c.l.b16 %v595
        %v598 = vunpack.c.h.b16 %v595
        %v599 = vpack.c.b16 %v597, %v597
        %v600 = vpack.c.b16 %v598, %v598
        %vm601 = vmor %vm444, %vm447
        %v602 = vrot.slane %v599, 7
        %v603 = vrot.slane %v602, 4
        %v604 = vrot.slane %v600, 7
        %v605 = vsel %vm601, %v603, %v604
        %v606 = vrot.slane %v604, 4
        %610 = vst [vmem:[#allocation2] sm:$0xe] %v602
        %611 = vst [vmem:[#allocation2 + $0x4] sm:$0xf] %v605
        %612 = vst [vmem:[#allocation2 + $0x8] sm:$0x1] %v606
        %v613 = vld [vmem:[#allocation2] sm:$0xf]
        %v614 = vld [vmem:[#allocation2 + $0x4] sm:$0xf]
        %v615 = vld [vmem:[#allocation4] sm:$0xff]
        %v616 = vld [vmem:[#allocation4 + $0x8] sm:$0xff]
        %v617 = vld [vmem:[#allocation4 + $0x10] sm:$0xff]
        %v618 = vld [vmem:[#allocation4 + $0x18] sm:$0xff]
        %v619 = vld [vmem:[#allocation4 + $0x20] sm:$0xff]
        %v620 = vld [vmem:[#allocation4 + $0x28] sm:$0xff]
        %v621 = vld [vmem:[#allocation4 + $0x30] sm:$0xff]
        %v622 = vld [vmem:[#allocation4 + $0x38] sm:$0xff]
        %v623 = vld [vmem:[#allocation4 + $0x40] sm:$0xff]
        %v624 = vld [vmem:[#allocation4 + $0x48] sm:$0xff]
        %v625 = vld [vmem:[#allocation4 + $0x50] sm:$0xff]
        %v626 = vld [vmem:[#allocation4 + $0x58] sm:$0xff]
        %v627 = vld [vmem:[#allocation4 + $0x60] sm:$0xff]
        %v628 = vld [vmem:[#allocation4 + $0x68] sm:$0xff]
        %v629 = vld [vmem:[#allocation4 + $0x70] sm:$0xff]
        %v630 = vld [vmem:[#allocation4 + $0x78] sm:$0xff]
        %v631 = vld [vmem:[#allocation2 + $0x8] sm:$0x1]
        %s632 = scalar_lea.vmem [#allocation4], 128
        %v633 = vld [vmem:[%s632] sm:$0xff]
        %v634 = vld [vmem:[%s632 + $0x8] sm:$0xff]
        %v635 = vld [vmem:[%s632 + $0x10] sm:$0xff]
        %v636 = vld [vmem:[%s632 + $0x18] sm:$0xff]
        %v637 = vld [vmem:[%s632 + $0x20] sm:$0xff]
        %v638 = vld [vmem:[%s632 + $0x28] sm:$0xff]
        %v639 = vld [vmem:[%s632 + $0x30] sm:$0xff]
        %v640 = vld [vmem:[%s632 + $0x38] sm:$0xff]
        %v641 = vld [vmem:[%s632 + $0x40] sm:$0xff]
        %v642 = vld [vmem:[%s632 + $0x48] sm:$0xff]
        %v643 = vld [vmem:[%s632 + $0x50] sm:$0xff]
        %v644 = vld [vmem:[%s632 + $0x58] sm:$0xff]
        %v645 = vld [vmem:[%s632 + $0x60] sm:$0xff]
        %v646 = vld [vmem:[%s632 + $0x68] sm:$0xff]
        %v647 = vld [vmem:[%s632 + $0x70] sm:$0xff]
        %v648 = vld [vmem:[%s632 + $0x78] sm:$0xff]
        %v652 = vunpack.c.l.b16 %v613
        %v653 = vunpack.c.l.b16 %v614
        %v654 = vunpack.c.l.b16 %v631
        %v655 = vpack.c.b16 %v653, %v652
        %v656 = vpack.c.b16 %v654, %v654
        %vm657 = vsmask.f32 7424
        %v659 = vshrl.u32 %v655, 16
        %v661 = vshll.u32 %v655, 16
        %v663 = vrot.slane %v661, 1
        %v664 = vor.u32 %v659, %v663
        %v666 = vshll.u32 %v656, 16
        %v668 = vrot.slane %v666, 1
        %v669 = vsel %vm657, %v664, %v668
        %v687 = vunpack.c.l.b16 %v633
        %v688 = vunpack.c.h.b16 %v633
        %v689 = vunpack.c.l.b16 %v634
        %v690 = vunpack.c.h.b16 %v634
        %v691 = vunpack.c.l.b16 %v635
        %v692 = vunpack.c.h.b16 %v635
        %v693 = vunpack.c.l.b16 %v636
        %v694 = vunpack.c.h.b16 %v636
        %v695 = vunpack.c.l.b16 %v637
        %v696 = vunpack.c.h.b16 %v637
        %v697 = vunpack.c.l.b16 %v638
        %v698 = vunpack.c.h.b16 %v638
        %v699 = vunpack.c.l.b16 %v639
        %v700 = vunpack.c.h.b16 %v639
        %v701 = vunpack.c.l.b16 %v640
        %v702 = vunpack.c.h.b16 %v640
        %v703 = vunpack.c.l.b16 %v641
        %v704 = vunpack.c.h.b16 %v641
        %v705 = vunpack.c.l.b16 %v642
        %v706 = vunpack.c.h.b16 %v642
        %v707 = vunpack.c.l.b16 %v643
        %v708 = vunpack.c.h.b16 %v643
        %v709 = vunpack.c.l.b16 %v644
        %v710 = vunpack.c.h.b16 %v644
        %v711 = vunpack.c.l.b16 %v645
        %v712 = vunpack.c.h.b16 %v645
        %v713 = vunpack.c.l.b16 %v646
        %v714 = vunpack.c.h.b16 %v646
        %v715 = vunpack.c.l.b16 %v647
        %v716 = vunpack.c.h.b16 %v647
        %v717 = vunpack.c.l.b16 %v648
        %v718 = vunpack.c.h.b16 %v648
        %v719 = vpack.c.b16 %v689, %v687
        %v720 = vpack.c.b16 %v690, %v688
        %v721 = vpack.c.b16 %v693, %v691
        %v722 = vpack.c.b16 %v694, %v692
        %v723 = vpack.c.b16 %v697, %v695
        %v724 = vpack.c.b16 %v698, %v696
        %v725 = vpack.c.b16 %v701, %v699
        %v726 = vpack.c.b16 %v702, %v700
        %v727 = vpack.c.b16 %v705, %v703
        %v728 = vpack.c.b16 %v706, %v704
        %v729 = vpack.c.b16 %v709, %v707
        %v730 = vpack.c.b16 %v710, %v708
        %v731 = vpack.c.b16 %v713, %v711
        %v732 = vpack.c.b16 %v714, %v712
        %v733 = vpack.c.b16 %v717, %v715
        %v734 = vpack.c.b16 %v718, %v716
        %751 = vmatprep.subr.bf16.mxu0 %v720
        %752 = vmatpush1.bf16.msra.mxu0 %v719
        %753 = vmatprep.subr.bf16.mxu0 %v722
        %754 = vmatpush1.bf16.msra.mxu0 %v721
        %755 = vmatprep.subr.bf16.mxu0 %v724
        %756 = vmatpush1.bf16.msra.mxu0 %v723
        %757 = vmatprep.subr.bf16.mxu0 %v726
        %758 = vmatpush1.bf16.msra.mxu0 %v725
        %759 = vmatprep.subr.bf16.mxu0 %v728
        %760 = vmatpush1.bf16.msra.mxu0 %v727
        %761 = vmatprep.subr.bf16.mxu0 %v730
        %762 = vmatpush1.bf16.msra.mxu0 %v729
        %763 = vmatprep.subr.bf16.mxu0 %v732
        %764 = vmatpush1.bf16.msra.mxu0 %v731
        %765 = vmatprep.subr.bf16.mxu0 %v734
        %766 = vmatpush1.bf16.msra.mxu0 %v733
        %767 = vmatprep.subr.bf16.mxu0 0
        %768 = vmatpush1.bf16.msra.mxu0 0
        %769 = vmatprep.subr.bf16.mxu0 0
        %770 = vmatpush1.bf16.msra.mxu0 0
        %771 = vmatprep.subr.bf16.mxu0 0
        %772 = vmatpush1.bf16.msra.mxu0 0
        %773 = vmatprep.subr.bf16.mxu0 0
        %774 = vmatpush1.bf16.msra.mxu0 0
        %775 = vmatprep.subr.bf16.mxu0 0
        %776 = vmatpush1.bf16.msra.mxu0 0
        %777 = vmatprep.subr.bf16.mxu0 0
        %778 = vmatpush1.bf16.msra.mxu0 0
        %779 = vmatprep.subr.bf16.mxu0 0
        %780 = vmatpush1.bf16.msra.mxu0 0
        %781 = vmatprep.subr.bf16.mxu0 0
        %782 = vmatpush1.bf16.msra.mxu0 0
        %783 = vmatprep.mubr.bf16.mxu0 0
        %784 = vmatmul.mubr.bf16.gmra.mrb[0].mxu0 %v669
        %v785 = vpop.f32.mrb[0].mxu0
        %v786 = vadd.f32 0.0, %v785
        %v787 = vpop.f32.mrb[0].mxu0
        %v788 = vadd.f32 0.0, %v787
        %v789 = vpop.f32.mrb[0].mxu0
        %v790 = vadd.f32 0.0, %v789
        %v791 = vpop.f32.mrb[0].mxu0
        %v792 = vadd.f32 0.0, %v791
        %793 = vdwg.mxu0
        %v811 = vunpack.c.l.b16 %v615
        %v812 = vunpack.c.h.b16 %v615
        %v813 = vunpack.c.l.b16 %v616
        %v814 = vunpack.c.h.b16 %v616
        %v815 = vunpack.c.l.b16 %v617
        %v816 = vunpack.c.h.b16 %v617
        %v817 = vunpack.c.l.b16 %v618
        %v818 = vunpack.c.h.b16 %v618
        %v819 = vunpack.c.l.b16 %v619
        %v820 = vunpack.c.h.b16 %v619
        %v821 = vunpack.c.l.b16 %v620
        %v822 = vunpack.c.h.b16 %v620
        %v823 = vunpack.c.l.b16 %v621
        %v824 = vunpack.c.h.b16 %v621
        %v825 = vunpack.c.l.b16 %v622
        %v826 = vunpack.c.h.b16 %v622
        %v827 = vunpack.c.l.b16 %v623
        %v828 = vunpack.c.h.b16 %v623
        %v829 = vunpack.c.l.b16 %v624
        %v830 = vunpack.c.h.b16 %v624
        %v831 = vunpack.c.l.b16 %v625
        %v832 = vunpack.c.h.b16 %v625
        %v833 = vunpack.c.l.b16 %v626
        %v834 = vunpack.c.h.b16 %v626
        %v835 = vunpack.c.l.b16 %v627
        %v836 = vunpack.c.h.b16 %v627
        %v837 = vunpack.c.l.b16 %v628
        %v838 = vunpack.c.h.b16 %v628
        %v839 = vunpack.c.l.b16 %v629
        %v840 = vunpack.c.h.b16 %v629
        %v841 = vunpack.c.l.b16 %v630
        %v842 = vunpack.c.h.b16 %v630
        %v843 = vpack.c.b16 %v813, %v811
        %v844 = vpack.c.b16 %v814, %v812
        %v845 = vpack.c.b16 %v817, %v815
        %v846 = vpack.c.b16 %v818, %v816
        %v847 = vpack.c.b16 %v821, %v819
        %v848 = vpack.c.b16 %v822, %v820
        %v849 = vpack.c.b16 %v825, %v823
        %v850 = vpack.c.b16 %v826, %v824
        %v851 = vpack.c.b16 %v829, %v827
        %v852 = vpack.c.b16 %v830, %v828
        %v853 = vpack.c.b16 %v833, %v831
        %v854 = vpack.c.b16 %v834, %v832
        %v855 = vpack.c.b16 %v837, %v835
        %v856 = vpack.c.b16 %v838, %v836
        %v857 = vpack.c.b16 %v841, %v839
        %v858 = vpack.c.b16 %v842, %v840
        %875 = vmatprep.subr.bf16.mxu0 %v844
        %876 = vmatpush1.bf16.msra.mxu0 %v843
        %877 = vmatprep.subr.bf16.mxu0 %v846
        %878 = vmatpush1.bf16.msra.mxu0 %v845
        %879 = vmatprep.subr.bf16.mxu0 %v848
        %880 = vmatpush1.bf16.msra.mxu0 %v847
        %881 = vmatprep.subr.bf16.mxu0 %v850
        %882 = vmatpush1.bf16.msra.mxu0 %v849
        %883 = vmatprep.subr.bf16.mxu0 %v852
        %884 = vmatpush1.bf16.msra.mxu0 %v851
        %885 = vmatprep.subr.bf16.mxu0 %v854
        %886 = vmatpush1.bf16.msra.mxu0 %v853
        %887 = vmatprep.subr.bf16.mxu0 %v856
        %888 = vmatpush1.bf16.msra.mxu0 %v855
        %889 = vmatprep.subr.bf16.mxu0 %v858
        %890 = vmatpush1.bf16.msra.mxu0 %v857
        %891 = vmatprep.subr.bf16.mxu0 0
        %892 = vmatpush1.bf16.msra.mxu0 0
        %893 = vmatprep.subr.bf16.mxu0 0
        %894 = vmatpush1.bf16.msra.mxu0 0
        %895 = vmatprep.subr.bf16.mxu0 0
        %896 = vmatpush1.bf16.msra.mxu0 0
        %897 = vmatprep.subr.bf16.mxu0 0
        %898 = vmatpush1.bf16.msra.mxu0 0
        %899 = vmatprep.subr.bf16.mxu0 0
        %900 = vmatpush1.bf16.msra.mxu0 0
        %901 = vmatprep.subr.bf16.mxu0 0
        %902 = vmatpush1.bf16.msra.mxu0 0
        %903 = vmatprep.subr.bf16.mxu0 0
        %904 = vmatpush1.bf16.msra.mxu0 0
        %905 = vmatprep.subr.bf16.mxu0 0
        %906 = vmatpush1.bf16.msra.mxu0 0
        %907 = vmatprep.mubr.bf16.mxu0 0
        %908 = vmatmul.mubr.bf16.gmra.mrb[0].mxu0 %v655
        %v909 = vpop.f32.mrb[0].mxu0
        %v910 = vadd.f32 %v786, %v909
        %v911 = vpop.f32.mrb[0].mxu0
        %v912 = vadd.f32 %v788, %v911
        %v913 = vpop.f32.mrb[0].mxu0
        %v914 = vadd.f32 %v790, %v913
        %v915 = vpop.f32.mrb[0].mxu0
        %v916 = vadd.f32 %v792, %v915
        %917 = vdwg.mxu0
        %v918 = vld [vmem:[#allocation2] sm:$0xe]
        %s919 = scalar_lea.vmem [#allocation4], 256
        %v920 = vld [vmem:[%s919] sm:$0xff]
        %v921 = vld [vmem:[%s919 + $0x8] sm:$0xff]
        %v922 = vld [vmem:[%s919 + $0x10] sm:$0xff]
        %v923 = vld [vmem:[%s919 + $0x18] sm:$0xff]
        %v924 = vld [vmem:[%s919 + $0x20] sm:$0xff]
        %v925 = vld [vmem:[%s919 + $0x28] sm:$0xff]
        %v926 = vld [vmem:[%s919 + $0x30] sm:$0xff]
        %v927 = vld [vmem:[%s919 + $0x38] sm:$0xff]
        %v928 = vld [vmem:[%s919 + $0x40] sm:$0xff]
        %v929 = vld [vmem:[%s919 + $0x48] sm:$0xff]
        %v930 = vld [vmem:[%s919 + $0x50] sm:$0xff]
        %v931 = vld [vmem:[%s919 + $0x58] sm:$0xff]
        %v932 = vld [vmem:[%s919 + $0x60] sm:$0xff]
        %v933 = vld [vmem:[%s919 + $0x68] sm:$0xff]
        %v934 = vld [vmem:[%s919 + $0x70] sm:$0xff]
        %v935 = vld [vmem:[%s919 + $0x78] sm:$0xff]
        %v937 = vunpack.c.l.b16 %v918
        %v938 = vpack.c.b16 %v653, %v937
        %vm939 = vcmask 1046528
        %v940 = vrot.slane %v938, 1
        %v941 = vrot.slane %v656, 1
        %v942 = vsel %vm939, %v940, %v941
        %v960 = vunpack.c.l.b16 %v920
        %v961 = vunpack.c.h.b16 %v920
        %v962 = vunpack.c.l.b16 %v921
        %v963 = vunpack.c.h.b16 %v921
        %v964 = vunpack.c.l.b16 %v922
        %v965 = vunpack.c.h.b16 %v922
        %v966 = vunpack.c.l.b16 %v923
        %v967 = vunpack.c.h.b16 %v923
        %v968 = vunpack.c.l.b16 %v924
        %v969 = vunpack.c.h.b16 %v924
        %v970 = vunpack.c.l.b16 %v925
        %v971 = vunpack.c.h.b16 %v925
        %v972 = vunpack.c.l.b16 %v926
        %v973 = vunpack.c.h.b16 %v926
        %v974 = vunpack.c.l.b16 %v927
        %v975 = vunpack.c.h.b16 %v927
        %v976 = vunpack.c.l.b16 %v928
        %v977 = vunpack.c.h.b16 %v928
        %v978 = vunpack.c.l.b16 %v929
        %v979 = vunpack.c.h.b16 %v929
        %v980 = vunpack.c.l.b16 %v930
        %v981 = vunpack.c.h.b16 %v930
        %v982 = vunpack.c.l.b16 %v931
        %v983 = vunpack.c.h.b16 %v931
        %v984 = vunpack.c.l.b16 %v932
        %v985 = vunpack.c.h.b16 %v932
        %v986 = vunpack.c.l.b16 %v933
        %v987 = vunpack.c.h.b16 %v933
        %v988 = vunpack.c.l.b16 %v934
        %v989 = vunpack.c.h.b16 %v934
        %v990 = vunpack.c.l.b16 %v935
        %v991 = vunpack.c.h.b16 %v935
        %v992 = vpack.c.b16 %v962, %v960
        %v993 = vpack.c.b16 %v963, %v961
        %v994 = vpack.c.b16 %v966, %v964
        %v995 = vpack.c.b16 %v967, %v965
        %v996 = vpack.c.b16 %v970, %v968
        %v997 = vpack.c.b16 %v971, %v969
        %v998 = vpack.c.b16 %v974, %v972
        %v999 = vpack.c.b16 %v975, %v973
        %v1000 = vpack.c.b16 %v978, %v976
        %v1001 = vpack.c.b16 %v979, %v977
        %v1002 = vpack.c.b16 %v982, %v980
        %v1003 = vpack.c.b16 %v983, %v981
        %v1004 = vpack.c.b16 %v986, %v984
        %v1005 = vpack.c.b16 %v987, %v985
        %v1006 = vpack.c.b16 %v990, %v988
        %v1007 = vpack.c.b16 %v991, %v989
        %1024 = vmatprep.subr.bf16.mxu0 %v993
        %1025 = vmatpush1.bf16.msra.mxu0 %v992
        %1026 = vmatprep.subr.bf16.mxu0 %v995
        %1027 = vmatpush1.bf16.msra.mxu0 %v994
        %1028 = vmatprep.subr.bf16.mxu0 %v997
        %1029 = vmatpush1.bf16.msra.mxu0 %v996
        %1030 = vmatprep.subr.bf16.mxu0 %v999
        %1031 = vmatpush1.bf16.msra.mxu0 %v998
        %1032 = vmatprep.subr.bf16.mxu0 %v1001
        %1033 = vmatpush1.bf16.msra.mxu0 %v1000
        %1034 = vmatprep.subr.bf16.mxu0 %v1003
        %1035 = vmatpush1.bf16.msra.mxu0 %v1002
        %1036 = vmatprep.subr.bf16.mxu0 %v1005
        %1037 = vmatpush1.bf16.msra.mxu0 %v1004
        %1038 = vmatprep.subr.bf16.mxu0 %v1007
        %1039 = vmatpush1.bf16.msra.mxu0 %v1006
        %1040 = vmatprep.subr.bf16.mxu0 0
        %1041 = vmatpush1.bf16.msra.mxu0 0
        %1042 = vmatprep.subr.bf16.mxu0 0
        %1043 = vmatpush1.bf16.msra.mxu0 0
        %1044 = vmatprep.subr.bf16.mxu0 0
        %1045 = vmatpush1.bf16.msra.mxu0 0
        %1046 = vmatprep.subr.bf16.mxu0 0
        %1047 = vmatpush1.bf16.msra.mxu0 0
        %1048 = vmatprep.subr.bf16.mxu0 0
        %1049 = vmatpush1.bf16.msra.mxu0 0
        %1050 = vmatprep.subr.bf16.mxu0 0
        %1051 = vmatpush1.bf16.msra.mxu0 0
        %1052 = vmatprep.subr.bf16.mxu0 0
        %1053 = vmatpush1.bf16.msra.mxu0 0
        %1054 = vmatprep.subr.bf16.mxu0 0
        %1055 = vmatpush1.bf16.msra.mxu0 0
        %1056 = vmatprep.mubr.bf16.mxu0 0
        %1057 = vmatmul.mubr.bf16.gmra.mrb[0].mxu0 %v942
        %v1058 = vpop.f32.mrb[0].mxu0
        %v1059 = vadd.f32 0.0, %v1058
        %v1060 = vpop.f32.mrb[0].mxu0
        %v1061 = vadd.f32 0.0, %v1060
        %v1062 = vpop.f32.mrb[0].mxu0
        %v1063 = vadd.f32 0.0, %v1062
        %v1064 = vpop.f32.mrb[0].mxu0
        %v1065 = vadd.f32 0.0, %v1064
        %1066 = vdwg.mxu0
        %v1067 = vadd.f32 %v910, %v1059
        %v1068 = vadd.f32 %v912, %v1061
        %v1069 = vadd.f32 %v914, %v1063
        %v1070 = vadd.f32 %v916, %v1065
        %v1071 = vld [vmem:[#allocation2 + $0x8] sm:$0x3]
        %s1072 = scalar_lea.vmem [#allocation4], 384
        %v1073 = vld [vmem:[%s1072] sm:$0xff]
        %v1074 = vld [vmem:[%s1072 + $0x8] sm:$0xff]
        %v1075 = vld [vmem:[%s1072 + $0x10] sm:$0xff]
        %v1076 = vld [vmem:[%s1072 + $0x18] sm:$0xff]
        %v1077 = vld [vmem:[%s1072 + $0x20] sm:$0xff]
        %v1078 = vld [vmem:[%s1072 + $0x28] sm:$0xff]
        %v1079 = vld [vmem:[%s1072 + $0x30] sm:$0xff]
        %v1080 = vld [vmem:[%s1072 + $0x38] sm:$0xff]
        %v1081 = vld [vmem:[%s1072 + $0x40] sm:$0xff]
        %v1082 = vld [vmem:[%s1072 + $0x48] sm:$0xff]
        %v1083 = vld [vmem:[%s1072 + $0x50] sm:$0xff]
        %v1084 = vld [vmem:[%s1072 + $0x58] sm:$0xff]
        %v1085 = vld [vmem:[%s1072 + $0x60] sm:$0xff]
        %v1086 = vld [vmem:[%s1072 + $0x68] sm:$0xff]
        %v1087 = vld [vmem:[%s1072 + $0x70] sm:$0xff]
        %v1088 = vld [vmem:[%s1072 + $0x78] sm:$0xff]
        %v1090 = vunpack.c.l.b16 %v1071
        %v1091 = vpack.c.b16 %v1090, %v1090
        %vm1092 = vsmask.f32 6400
        %v1094 = vshrl.u32 %v938, 16
        %v1096 = vrot.slane %v1094, 1
        %v1097 = vshll.u32 %v938, 16
        %v1099 = vrot.slane %v1097, 2
        %v1100 = vor.u32 %v1096, %v1099
        %v1102 = vshrl.u32 %v1091, 16
        %v1104 = vrot.slane %v1102, 1
        %v1105 = vshll.u32 %v1091, 16
        %v1107 = vrot.slane %v1105, 2
        %v1108 = vor.u32 %v1104, %v1107
        %v1109 = vsel %vm1092, %v1100, %v1108
        %v1127 = vunpack.c.l.b16 %v1073
        %v1128 = vunpack.c.h.b16 %v1073
        %v1129 = vunpack.c.l.b16 %v1074
        %v1130 = vunpack.c.h.b16 %v1074
        %v1131 = vunpack.c.l.b16 %v1075
        %v1132 = vunpack.c.h.b16 %v1075
        %v1133 = vunpack.c.l.b16 %v1076
        %v1134 = vunpack.c.h.b16 %v1076
        %v1135 = vunpack.c.l.b16 %v1077
        %v1136 = vunpack.c.h.b16 %v1077
        %v1137 = vunpack.c.l.b16 %v1078
        %v1138 = vunpack.c.h.b16 %v1078
        %v1139 = vunpack.c.l.b16 %v1079
        %v1140 = vunpack.c.h.b16 %v1079
        %v1141 = vunpack.c.l.b16 %v1080
        %v1142 = vunpack.c.h.b16 %v1080
        %v1143 = vunpack.c.l.b16 %v1081
        %v1144 = vunpack.c.h.b16 %v1081
        %v1145 = vunpack.c.l.b16 %v1082
        %v1146 = vunpack.c.h.b16 %v1082
        %v1147 = vunpack.c.l.b16 %v1083
        %v1148 = vunpack.c.h.b16 %v1083
        %v1149 = vunpack.c.l.b16 %v1084
        %v1150 = vunpack.c.h.b16 %v1084
        %v1151 = vunpack.c.l.b16 %v1085
        %v1152 = vunpack.c.h.b16 %v1085
        %v1153 = vunpack.c.l.b16 %v1086
        %v1154 = vunpack.c.h.b16 %v1086
        %v1155 = vunpack.c.l.b16 %v1087
        %v1156 = vunpack.c.h.b16 %v1087
        %v1157 = vunpack.c.l.b16 %v1088
        %v1158 = vunpack.c.h.b16 %v1088
        %v1159 = vpack.c.b16 %v1129, %v1127
        %v1160 = vpack.c.b16 %v1130, %v1128
        %v1161 = vpack.c.b16 %v1133, %v1131
        %v1162 = vpack.c.b16 %v1134, %v1132
        %v1163 = vpack.c.b16 %v1137, %v1135
        %v1164 = vpack.c.b16 %v1138, %v1136
        %v1165 = vpack.c.b16 %v1141, %v1139
        %v1166 = vpack.c.b16 %v1142, %v1140
        %v1167 = vpack.c.b16 %v1145, %v1143
        %v1168 = vpack.c.b16 %v1146, %v1144
        %v1169 = vpack.c.b16 %v1149, %v1147
        %v1170 = vpack.c.b16 %v1150, %v1148
        %v1171 = vpack.c.b16 %v1153, %v1151
        %v1172 = vpack.c.b16 %v1154, %v1152
        %v1173 = vpack.c.b16 %v1157, %v1155
        %v1174 = vpack.c.b16 %v1158, %v1156
        %1191 = vmatprep.subr.bf16.mxu0 %v1160
        %1192 = vmatpush1.bf16.msra.mxu0 %v1159
        %1193 = vmatprep.subr.bf16.mxu0 %v1162
        %1194 = vmatpush1.bf16.msra.mxu0 %v1161
        %1195 = vmatprep.subr.bf16.mxu0 %v1164
        %1196 = vmatpush1.bf16.msra.mxu0 %v1163
        %1197 = vmatprep.subr.bf16.mxu0 %v1166
        %1198 = vmatpush1.bf16.msra.mxu0 %v1165
        %1199 = vmatprep.subr.bf16.mxu0 %v1168
        %1200 = vmatpush1.bf16.msra.mxu0 %v1167
        %1201 = vmatprep.subr.bf16.mxu0 %v1170
        %1202 = vmatpush1.bf16.msra.mxu0 %v1169
        %1203 = vmatprep.subr.bf16.mxu0 %v1172
        %1204 = vmatpush1.bf16.msra.mxu0 %v1171
        %1205 = vmatprep.subr.bf16.mxu0 %v1174
        %1206 = vmatpush1.bf16.msra.mxu0 %v1173
        %1207 = vmatprep.subr.bf16.mxu0 0
        %1208 = vmatpush1.bf16.msra.mxu0 0
        %1209 = vmatprep.subr.bf16.mxu0 0
        %1210 = vmatpush1.bf16.msra.mxu0 0
        %1211 = vmatprep.subr.bf16.mxu0 0
        %1212 = vmatpush1.bf16.msra.mxu0 0
        %1213 = vmatprep.subr.bf16.mxu0 0
        %1214 = vmatpush1.bf16.msra.mxu0 0
        %1215 = vmatprep.subr.bf16.mxu0 0
        %1216 = vmatpush1.bf16.msra.mxu0 0
        %1217 = vmatprep.subr.bf16.mxu0 0
        %1218 = vmatpush1.bf16.msra.mxu0 0
        %1219 = vmatprep.subr.bf16.mxu0 0
        %1220 = vmatpush1.bf16.msra.mxu0 0
        %1221 = vmatprep.subr.bf16.mxu0 0
        %1222 = vmatpush1.bf16.msra.mxu0 0
        %1223 = vmatprep.mubr.bf16.mxu0 0
        %1224 = vmatmul.mubr.bf16.gmra.mrb[0].mxu0 %v1109
        %v1225 = vpop.f32.mrb[0].mxu0
        %v1226 = vadd.f32 0.0, %v1225
        %v1227 = vpop.f32.mrb[0].mxu0
        %v1228 = vadd.f32 0.0, %v1227
        %v1229 = vpop.f32.mrb[0].mxu0
        %v1230 = vadd.f32 0.0, %v1229
        %v1231 = vpop.f32.mrb[0].mxu0
        %v1232 = vadd.f32 0.0, %v1231
        %1233 = vdwg.mxu0
        %v1234 = vadd.f32 %v1067, %v1226
        %v1235 = vadd.f32 %v1068, %v1228
        %v1236 = vadd.f32 %v1069, %v1230
        %v1237 = vadd.f32 %v1070, %v1232
        %v1238 = vld [vmem:[#allocation2] sm:$0xc]
        %s1239 = scalar_lea.vmem [#allocation4], 512
        %v1240 = vld [vmem:[%s1239] sm:$0xff]
        %v1241 = vld [vmem:[%s1239 + $0x8] sm:$0xff]
        %v1242 = vld [vmem:[%s1239 + $0x10] sm:$0xff]
        %v1243 = vld [vmem:[%s1239 + $0x18] sm:$0xff]
        %v1244 = vld [vmem:[%s1239 + $0x20] sm:$0xff]
        %v1245 = vld [vmem:[%s1239 + $0x28] sm:$0xff]
        %v1246 = vld [vmem:[%s1239 + $0x30] sm:$0xff]
        %v1247 = vld [vmem:[%s1239 + $0x38] sm:$0xff]
        %v1248 = vld [vmem:[%s1239 + $0x40] sm:$0xff]
        %v1249 = vld [vmem:[%s1239 + $0x48] sm:$0xff]
        %v1250 = vld [vmem:[%s1239 + $0x50] sm:$0xff]
        %v1251 = vld [vmem:[%s1239 + $0x58] sm:$0xff]
        %v1252 = vld [vmem:[%s1239 + $0x60] sm:$0xff]
        %v1253 = vld [vmem:[%s1239 + $0x68] sm:$0xff]
        %v1254 = vld [vmem:[%s1239 + $0x70] sm:$0xff]
        %v1255 = vld [vmem:[%s1239 + $0x78] sm:$0xff]
        %v1257 = vunpack.c.l.b16 %v1238
        %v1258 = vpack.c.b16 %v653, %v1257
        %vm1259 = vcmask 1045504
        %v1260 = vrot.slane %v1258, 2
        %v1261 = vrot.slane %v1091, 2
        %v1262 = vsel %vm1259, %v1260, %v1261
        %v1280 = vunpack.c.l.b16 %v1240
        %v1281 = vunpack.c.h.b16 %v1240
        %v1282 = vunpack.c.l.b16 %v1241
        %v1283 = vunpack.c.h.b16 %v1241
        %v1284 = vunpack.c.l.b16 %v1242
        %v1285 = vunpack.c.h.b16 %v1242
        %v1286 = vunpack.c.l.b16 %v1243
        %v1287 = vunpack.c.h.b16 %v1243
        %v1288 = vunpack.c.l.b16 %v1244
        %v1289 = vunpack.c.h.b16 %v1244
        %v1290 = vunpack.c.l.b16 %v1245
        %v1291 = vunpack.c.h.b16 %v1245
        %v1292 = vunpack.c.l.b16 %v1246
        %v1293 = vunpack.c.h.b16 %v1246
        %v1294 = vunpack.c.l.b16 %v1247
        %v1295 = vunpack.c.h.b16 %v1247
        %v1296 = vunpack.c.l.b16 %v1248
        %v1297 = vunpack.c.h.b16 %v1248
        %v1298 = vunpack.c.l.b16 %v1249
        %v1299 = vunpack.c.h.b16 %v1249
        %v1300 = vunpack.c.l.b16 %v1250
        %v1301 = vunpack.c.h.b16 %v1250
        %v1302 = vunpack.c.l.b16 %v1251
        %v1303 = vunpack.c.h.b16 %v1251
        %v1304 = vunpack.c.l.b16 %v1252
        %v1305 = vunpack.c.h.b16 %v1252
        %v1306 = vunpack.c.l.b16 %v1253
        %v1307 = vunpack.c.h.b16 %v1253
        %v1308 = vunpack.c.l.b16 %v1254
        %v1309 = vunpack.c.h.b16 %v1254
        %v1310 = vunpack.c.l.b16 %v1255
        %v1311 = vunpack.c.h.b16 %v1255
        %v1312 = vpack.c.b16 %v1282, %v1280
        %v1313 = vpack.c.b16 %v1283, %v1281
        %v1314 = vpack.c.b16 %v1286, %v1284
        %v1315 = vpack.c.b16 %v1287, %v1285
        %v1316 = vpack.c.b16 %v1290, %v1288
        %v1317 = vpack.c.b16 %v1291, %v1289
        %v1318 = vpack.c.b16 %v1294, %v1292
        %v1319 = vpack.c.b16 %v1295, %v1293
        %v1320 = vpack.c.b16 %v1298, %v1296
        %v1321 = vpack.c.b16 %v1299, %v1297
        %v1322 = vpack.c.b16 %v1302, %v1300
        %v1323 = vpack.c.b16 %v1303, %v1301
        %v1324 = vpack.c.b16 %v1306, %v1304
        %v1325 = vpack.c.b16 %v1307, %v1305
        %v1326 = vpack.c.b16 %v1310, %v1308
        %v1327 = vpack.c.b16 %v1311, %v1309
        %1344 = vmatprep.subr.bf16.mxu0 %v1313
        %1345 = vmatpush1.bf16.msra.mxu0 %v1312
        %1346 = vmatprep.subr.bf16.mxu0 %v1315
        %1347 = vmatpush1.bf16.msra.mxu0 %v1314
        %1348 = vmatprep.subr.bf16.mxu0 %v1317
        %1349 = vmatpush1.bf16.msra.mxu0 %v1316
        %1350 = vmatprep.subr.bf16.mxu0 %v1319
        %1351 = vmatpush1.bf16.msra.mxu0 %v1318
        %1352 = vmatprep.subr.bf16.mxu0 %v1321
        %1353 = vmatpush1.bf16.msra.mxu0 %v1320
        %1354 = vmatprep.subr.bf16.mxu0 %v1323
        %1355 = vmatpush1.bf16.msra.mxu0 %v1322
        %1356 = vmatprep.subr.bf16.mxu0 %v1325
        %1357 = vmatpush1.bf16.msra.mxu0 %v1324
        %1358 = vmatprep.subr.bf16.mxu0 %v1327
        %1359 = vmatpush1.bf16.msra.mxu0 %v1326
        %1360 = vmatprep.subr.bf16.mxu0 0
        %1361 = vmatpush1.bf16.msra.mxu0 0
        %1362 = vmatprep.subr.bf16.mxu0 0
        %1363 = vmatpush1.bf16.msra.mxu0 0
        %1364 = vmatprep.subr.bf16.mxu0 0
        %1365 = vmatpush1.bf16.msra.mxu0 0
        %1366 = vmatprep.subr.bf16.mxu0 0
        %1367 = vmatpush1.bf16.msra.mxu0 0
        %1368 = vmatprep.subr.bf16.mxu0 0
        %1369 = vmatpush1.bf16.msra.mxu0 0
        %1370 = vmatprep.subr.bf16.mxu0 0
        %1371 = vmatpush1.bf16.msra.mxu0 0
        %1372 = vmatprep.subr.bf16.mxu0 0
        %1373 = vmatpush1.bf16.msra.mxu0 0
        %1374 = vmatprep.subr.bf16.mxu0 0
        %1375 = vmatpush1.bf16.msra.mxu0 0
        %1376 = vmatprep.mubr.bf16.mxu0 0
        %1377 = vmatmul.mubr.bf16.gmra.mrb[0].mxu0 %v1262
        %v1378 = vpop.f32.mrb[0].mxu0
        %v1379 = vadd.f32 0.0, %v1378
        %v1380 = vpop.f32.mrb[0].mxu0
        %v1381 = vadd.f32 0.0, %v1380
        %v1382 = vpop.f32.mrb[0].mxu0
        %v1383 = vadd.f32 0.0, %v1382
        %v1384 = vpop.f32.mrb[0].mxu0
        %v1385 = vadd.f32 0.0, %v1384
        %1386 = vdwg.mxu0
        %v1387 = vadd.f32 %v1234, %v1379
        %v1388 = vadd.f32 %v1235, %v1381
        %v1389 = vadd.f32 %v1236, %v1383
        %v1390 = vadd.f32 %v1237, %v1385
        %v1391 = vld [vmem:[%s5] sm:$0x3]
        %v1393 = vlaneseq
        %v1394 = vshrl.u32 %v1393, 7
        %v1395 = vsub.s32 0, %v1394
        %v1396 = vrot.slane %v1391, %v1395
        %v1397 = vlaneseq
        %v1398 = vshrl.u32 %v1397, 7
        %v1399 = vsub.s32 1, %v1398
        %v1400 = vrot.slane %v1391, %v1399
        %v1403 = vmul.f32 %v1387, %v1396
        %v1404 = vmul.f32 %v1388, %v1400
        %v1405 = vmul.f32 %v1389, %v1396
        %v1406 = vmul.f32 %v1390, %v1400
        %v1407 = vld [vmem:[%s6] sm:$0x3]
        %v1409 = vlaneseq
        %v1410 = vshrl.u32 %v1409, 7
        %v1411 = vsub.s32 0, %v1410
        %v1412 = vrot.slane %v1407, %v1411
        %v1413 = vlaneseq
        %v1414 = vshrl.u32 %v1413, 7
        %v1415 = vsub.s32 1, %v1414
        %v1416 = vrot.slane %v1407, %v1415
        %v1419 = vadd.f32 %v1403, %v1412
        %v1420 = vadd.f32 %v1404, %v1416
        %v1421 = vadd.f32 %v1405, %v1412
        %v1422 = vadd.f32 %v1406, %v1416
        %v1423 = vmax.f32 %v1419, 0.0
        %v1424 = vmax.f32 %v1420, 0.0
        %v1425 = vmax.f32 %v1421, 0.0
        %v1426 = vmax.f32 %v1422, 0.0
        %v1427 = vpack.c.bf16 %v1425, %v1423
        %v1428 = vpack.c.bf16 %v1426, %v1424
        %v1431 = vunpack.c.l.b16 %v1427
        %v1432 = vunpack.c.l.b16 %v1428
        %v1433 = vunpack.c.h.b16 %v1427
        %v1434 = vunpack.c.h.b16 %v1428
        %v1435 = vpack.c.b16 %v1432, %v1431
        %v1436 = vpack.c.b16 %v1434, %v1433
        %vm1437 = vsmask.f32 4368
        %vm1438 = vmor %vm445, %vm1437
        %v1440 = vshrl.u32 %v1435, 16
        %v1442 = vrot.slane %v1440, 7
        %v1443 = vshll.u32 %v1435, 16
        %v1445 = vor.u32 %v1442, %v1443
        %v1446 = vrot.slane %v1442, 4
        %v1448 = vshrl.u32 %v1436, 16
        %v1450 = vrot.slane %v1448, 7
        %v1451 = vshll.u32 %v1436, 16
        %v1453 = vor.u32 %v1450, %v1451
        %v1454 = vsel %vm1438, %v1446, %v1453
        %v1455 = vrot.slane %v1450, 4
        %vm1459 = vcmask 1043456
        %vm1460 = vmand %vm1459, %vm454
        %vm1461 = vcmask 1047556
        %vm1462 = vmand %vm1461, %vm456
        %vm1463 = vmor %vm1462, %vm1460
        %v1464 = vld [vmem:[#allocation3] sm:$0xff]
        %v1465 = vsel %vm1463, %v1445, %v1464
        %1466 = vst [vmem:[#allocation3] sm:$0xff] %v1465
        %1467 = vst [vmem:[#allocation3 + $0x8] sm:$0xff] %v1454
        %v1468 = vld [vmem:[#allocation3 + $0x10] sm:$0x11]
        %v1469 = vsel %vm450, %v1455, %v1468
        %1470 = vst [vmem:[#allocation3 + $0x10] sm:$0x11] %v1469
        %v1471 = vld [vmem:[#allocation3] sm:$0xff]
        %v1472 = vld [vmem:[#allocation3 + $0x8] sm:$0xff]
        %v1473 = vld [vmem:[#allocation7] sm:$0xf]
        %v1474 = vld [vmem:[#allocation7 + $0x4] sm:$0xf]
        %v1475 = vld [vmem:[#allocation7 + $0x8] sm:$0xf]
        %v1476 = vld [vmem:[#allocation7 + $0xc] sm:$0xf]
        %v1477 = vld [vmem:[#allocation7 + $0x10] sm:$0xf]
        %v1478 = vld [vmem:[#allocation7 + $0x14] sm:$0xf]
        %v1479 = vld [vmem:[#allocation7 + $0x18] sm:$0xf]
        %v1480 = vld [vmem:[#allocation7 + $0x1c] sm:$0xf]
        %v1481 = vld [vmem:[#allocation7 + $0x20] sm:$0xf]
        %v1482 = vld [vmem:[#allocation7 + $0x24] sm:$0xf]
        %v1483 = vld [vmem:[#allocation7 + $0x28] sm:$0xf]
        %v1484 = vld [vmem:[#allocation7 + $0x2c] sm:$0xf]
        %v1485 = vld [vmem:[#allocation7 + $0x30] sm:$0xf]
        %v1486 = vld [vmem:[#allocation7 + $0x34] sm:$0xf]
        %v1487 = vld [vmem:[#allocation7 + $0x38] sm:$0xf]
        %v1488 = vld [vmem:[#allocation7 + $0x3c] sm:$0xf]
        %v1489 = vld [vmem:[#allocation7 + $0x40] sm:$0xf]
        %v1490 = vld [vmem:[#allocation7 + $0x44] sm:$0xf]
        %v1491 = vld [vmem:[#allocation7 + $0x48] sm:$0xf]
        %v1492 = vld [vmem:[#allocation7 + $0x4c] sm:$0xf]
        %v1493 = vld [vmem:[#allocation7 + $0x50] sm:$0xf]
        %v1494 = vld [vmem:[#allocation7 + $0x54] sm:$0xf]
        %v1495 = vld [vmem:[#allocation7 + $0x58] sm:$0xf]
        %v1496 = vld [vmem:[#allocation7 + $0x5c] sm:$0xf]
        %v1497 = vld [vmem:[#allocation7 + $0x60] sm:$0xf]
        %v1498 = vld [vmem:[#allocation7 + $0x64] sm:$0xf]
        %v1499 = vld [vmem:[#allocation7 + $0x68] sm:$0xf]
        %v1500 = vld [vmem:[#allocation7 + $0x6c] sm:$0xf]
        %v1501 = vld [vmem:[#allocation7 + $0x70] sm:$0xf]
        %v1502 = vld [vmem:[#allocation7 + $0x74] sm:$0xf]
        %v1503 = vld [vmem:[#allocation7 + $0x78] sm:$0xf]
        %v1504 = vld [vmem:[#allocation7 + $0x7c] sm:$0xf]
        %v1505 = vld [vmem:[#allocation3 + $0x10] sm:$0x11]
        %s1506 = scalar_lea.vmem [#allocation7], 128
        %v1507 = vld [vmem:[%s1506] sm:$0xf]
        %v1508 = vld [vmem:[%s1506 + $0x4] sm:$0xf]
        %v1509 = vld [vmem:[%s1506 + $0x8] sm:$0xf]
        %v1510 = vld [vmem:[%s1506 + $0xc] sm:$0xf]
        %v1511 = vld [vmem:[%s1506 + $0x10] sm:$0xf]
        %v1512 = vld [vmem:[%s1506 + $0x14] sm:$0xf]
        %v1513 = vld [vmem:[%s1506 + $0x18] sm:$0xf]
        %v1514 = vld [vmem:[%s1506 + $0x1c] sm:$0xf]
        %v1515 = vld [vmem:[%s1506 + $0x20] sm:$0xf]
        %v1516 = vld [vmem:[%s1506 + $0x24] sm:$0xf]
        %v1517 = vld [vmem:[%s1506 + $0x28] sm:$0xf]
        %v1518 = vld [vmem:[%s1506 + $0x2c] sm:$0xf]
        %v1519 = vld [vmem:[%s1506 + $0x30] sm:$0xf]
        %v1520 = vld [vmem:[%s1506 + $0x34] sm:$0xf]
        %v1521 = vld [vmem:[%s1506 + $0x38] sm:$0xf]
        %v1522 = vld [vmem:[%s1506 + $0x3c] sm:$0xf]
        %v1523 = vld [vmem:[%s1506 + $0x40] sm:$0xf]
        %v1524 = vld [vmem:[%s1506 + $0x44] sm:$0xf]
        %v1525 = vld [vmem:[%s1506 + $0x48] sm:$0xf]
        %v1526 = vld [vmem:[%s1506 + $0x4c] sm:$0xf]
        %v1527 = vld [vmem:[%s1506 + $0x50] sm:$0xf]
        %v1528 = vld [vmem:[%s1506 + $0x54] sm:$0xf]
        %v1529 = vld [vmem:[%s1506 + $0x58] sm:$0xf]
        %v1530 = vld [vmem:[%s1506 + $0x5c] sm:$0xf]
        %v1531 = vld [vmem:[%s1506 + $0x60] sm:$0xf]
        %v1532 = vld [vmem:[%s1506 + $0x64] sm:$0xf]
        %v1533 = vld [vmem:[%s1506 + $0x68] sm:$0xf]
        %v1534 = vld [vmem:[%s1506 + $0x6c] sm:$0xf]
        %v1535 = vld [vmem:[%s1506 + $0x70] sm:$0xf]
        %v1536 = vld [vmem:[%s1506 + $0x74] sm:$0xf]
        %v1537 = vld [vmem:[%s1506 + $0x78] sm:$0xf]
        %v1538 = vld [vmem:[%s1506 + $0x7c] sm:$0xf]
        %v1542 = vunpack.c.l.b16 %v1471
        %v1543 = vunpack.c.h.b16 %v1471
        %v1544 = vunpack.c.l.b16 %v1472
        %v1545 = vunpack.c.h.b16 %v1472
        %v1546 = vunpack.c.l.b16 %v1505
        %v1547 = vunpack.c.h.b16 %v1505
        %v1548 = vpack.c.b16 %v1544, %v1542
        %v1549 = vpack.c.b16 %v1545, %v1543
        %v1550 = vpack.c.b16 %v1546, %v1546
        %v1551 = vpack.c.b16 %v1547, %v1547
        %v1553 = vshrl.u32 %v1548, 16
        %v1555 = vshll.u32 %v1548, 16
        %v1557 = vrot.slane %v1555, 1
        %v1558 = vor.u32 %v1553, %v1557
        %v1560 = vshll.u32 %v1550, 16
        %v1562 = vrot.slane %v1560, 1
        %v1563 = vsel %vm657, %v1558, %v1562
        %v1565 = vshrl.u32 %v1549, 16
        %v1567 = vshll.u32 %v1549, 16
        %v1569 = vrot.slane %v1567, 1
        %v1570 = vor.u32 %v1565, %v1569
        %v1572 = vshll.u32 %v1551, 16
        %v1574 = vrot.slane %v1572, 1
        %v1575 = vsel %vm657, %v1570, %v1574
        %v1610 = vunpack.c.l.b16 %v1507
        %v1611 = vunpack.c.l.b16 %v1508
        %v1612 = vunpack.c.l.b16 %v1509
        %v1613 = vunpack.c.l.b16 %v1510
        %v1614 = vunpack.c.l.b16 %v1511
        %v1615 = vunpack.c.l.b16 %v1512
        %v1616 = vunpack.c.l.b16 %v1513
        %v1617 = vunpack.c.l.b16 %v1514
        %v1618 = vunpack.c.l.b16 %v1515
        %v1619 = vunpack.c.l.b16 %v1516
        %v1620 = vunpack.c.l.b16 %v1517
        %v1621 = vunpack.c.l.b16 %v1518
        %v1622 = vunpack.c.l.b16 %v1519
        %v1623 = vunpack.c.l.b16 %v1520
        %v1624 = vunpack.c.l.b16 %v1521
        %v1625 = vunpack.c.l.b16 %v1522
        %v1626 = vunpack.c.l.b16 %v1523
        %v1627 = vunpack.c.l.b16 %v1524
        %v1628 = vunpack.c.l.b16 %v1525
        %v1629 = vunpack.c.l.b16 %v1526
        %v1630 = vunpack.c.l.b16 %v1527
        %v1631 = vunpack.c.l.b16 %v1528
        %v1632 = vunpack.c.l.b16 %v1529
        %v1633 = vunpack.c.l.b16 %v1530
        %v1634 = vunpack.c.l.b16 %v1531
        %v1635 = vunpack.c.l.b16 %v1532
        %v1636 = vunpack.c.l.b16 %v1533
        %v1637 = vunpack.c.l.b16 %v1534
        %v1638 = vunpack.c.l.b16 %v1535
        %v1639 = vunpack.c.l.b16 %v1536
        %v1640 = vunpack.c.l.b16 %v1537
        %v1641 = vunpack.c.l.b16 %v1538
        %v1642 = vpack.c.b16 %v1611, %v1610
        %v1643 = vpack.c.b16 %v1613, %v1612
        %v1644 = vpack.c.b16 %v1615, %v1614
        %v1645 = vpack.c.b16 %v1617, %v1616
        %v1646 = vpack.c.b16 %v1619, %v1618
        %v1647 = vpack.c.b16 %v1621, %v1620
        %v1648 = vpack.c.b16 %v1623, %v1622
        %v1649 = vpack.c.b16 %v1625, %v1624
        %v1650 = vpack.c.b16 %v1627, %v1626
        %v1651 = vpack.c.b16 %v1629, %v1628
        %v1652 = vpack.c.b16 %v1631, %v1630
        %v1653 = vpack.c.b16 %v1633, %v1632
        %v1654 = vpack.c.b16 %v1635, %v1634
        %v1655 = vpack.c.b16 %v1637, %v1636
        %v1656 = vpack.c.b16 %v1639, %v1638
        %v1657 = vpack.c.b16 %v1641, %v1640
        %1674 = vmatprep.subr.bf16.mxu0 0
        %1675 = vmatpush1.bf16.msra.mxu0 %v1642
        %1676 = vmatprep.subr.bf16.mxu0 0
        %1677 = vmatpush1.bf16.msra.mxu0 %v1643
        %1678 = vmatprep.subr.bf16.mxu0 0
        %1679 = vmatpush1.bf16.msra.mxu0 %v1644
        %1680 = vmatprep.subr.bf16.mxu0 0
        %1681 = vmatpush1.bf16.msra.mxu0 %v1645
        %1682 = vmatprep.subr.bf16.mxu0 0
        %1683 = vmatpush1.bf16.msra.mxu0 %v1646
        %1684 = vmatprep.subr.bf16.mxu0 0
        %1685 = vmatpush1.bf16.msra.mxu0 %v1647
        %1686 = vmatprep.subr.bf16.mxu0 0
        %1687 = vmatpush1.bf16.msra.mxu0 %v1648
        %1688 = vmatprep.subr.bf16.mxu0 0
        %1689 = vmatpush1.bf16.msra.mxu0 %v1649
        %1690 = vmatprep.subr.bf16.mxu0 0
        %1691 = vmatpush1.bf16.msra.mxu0 %v1650
        %1692 = vmatprep.subr.bf16.mxu0 0
        %1693 = vmatpush1.bf16.msra.mxu0 %v1651
        %1694 = vmatprep.subr.bf16.mxu0 0
        %1695 = vmatpush1.bf16.msra.mxu0 %v1652
        %1696 = vmatprep.subr.bf16.mxu0 0
        %1697 = vmatpush1.bf16.msra.mxu0 %v1653
        %1698 = vmatprep.subr.bf16.mxu0 0
        %1699 = vmatpush1.bf16.msra.mxu0 %v1654
        %1700 = vmatprep.subr.bf16.mxu0 0
        %1701 = vmatpush1.bf16.msra.mxu0 %v1655
        %1702 = vmatprep.subr.bf16.mxu0 0
        %1703 = vmatpush1.bf16.msra.mxu0 %v1656
        %1704 = vmatprep.subr.bf16.mxu0 0
        %1705 = vmatpush1.bf16.msra.mxu0 %v1657
        %1706 = vmatprep.mubr.bf16.mxu0 %v1575
        %1707 = vmatmul.mubr.bf16.gmra.mrb[0].mxu0 %v1563
        %v1708 = vpop.f32.mrb[0].mxu0
        %v1709 = vadd.f32 0.0, %v1708
        %v1710 = vpop.f32.mrb[0].mxu0
        %v1711 = vpop.f32.mrb[0].mxu0
        %v1712 = vadd.f32 0.0, %v1711
        %v1713 = vpop.f32.mrb[0].mxu0
        %1714 = vdwg.mxu0
        %v1749 = vunpack.c.l.b16 %v1473
        %v1750 = vunpack.c.l.b16 %v1474
        %v1751 = vunpack.c.l.b16 %v1475
        %v1752 = vunpack.c.l.b16 %v1476
        %v1753 = vunpack.c.l.b16 %v1477
        %v1754 = vunpack.c.l.b16 %v1478
        %v1755 = vunpack.c.l.b16 %v1479
        %v1756 = vunpack.c.l.b16 %v1480
        %v1757 = vunpack.c.l.b16 %v1481
        %v1758 = vunpack.c.l.b16 %v1482
        %v1759 = vunpack.c.l.b16 %v1483
        %v1760 = vunpack.c.l.b16 %v1484
        %v1761 = vunpack.c.l.b16 %v1485
        %v1762 = vunpack.c.l.b16 %v1486
        %v1763 = vunpack.c.l.b16 %v1487
        %v1764 = vunpack.c.l.b16 %v1488
        %v1765 = vunpack.c.l.b16 %v1489
        %v1766 = vunpack.c.l.b16 %v1490
        %v1767 = vunpack.c.l.b16 %v1491
        %v1768 = vunpack.c.l.b16 %v1492
        %v1769 = vunpack.c.l.b16 %v1493
        %v1770 = vunpack.c.l.b16 %v1494
        %v1771 = vunpack.c.l.b16 %v1495
        %v1772 = vunpack.c.l.b16 %v1496
        %v1773 = vunpack.c.l.b16 %v1497
        %v1774 = vunpack.c.l.b16 %v1498
        %v1775 = vunpack.c.l.b16 %v1499
        %v1776 = vunpack.c.l.b16 %v1500
        %v1777 = vunpack.c.l.b16 %v1501
        %v1778 = vunpack.c.l.b16 %v1502
        %v1779 = vunpack.c.l.b16 %v1503
        %v1780 = vunpack.c.l.b16 %v1504
        %v1781 = vpack.c.b16 %v1750, %v1749
        %v1782 = vpack.c.b16 %v1752, %v1751
        %v1783 = vpack.c.b16 %v1754, %v1753
        %v1784 = vpack.c.b16 %v1756, %v1755
        %v1785 = vpack.c.b16 %v1758, %v1757
        %v1786 = vpack.c.b16 %v1760, %v1759
        %v1787 = vpack.c.b16 %v1762, %v1761
        %v1788 = vpack.c.b16 %v1764, %v1763
        %v1789 = vpack.c.b16 %v1766, %v1765
        %v1790 = vpack.c.b16 %v1768, %v1767
        %v1791 = vpack.c.b16 %v1770, %v1769
        %v1792 = vpack.c.b16 %v1772, %v1771
        %v1793 = vpack.c.b16 %v1774, %v1773
        %v1794 = vpack.c.b16 %v1776, %v1775
        %v1795 = vpack.c.b16 %v1778, %v1777
        %v1796 = vpack.c.b16 %v1780, %v1779
        %1813 = vmatprep.subr.bf16.mxu0 0
        %1814 = vmatpush1.bf16.msra.mxu0 %v1781
        %1815 = vmatprep.subr.bf16.mxu0 0
        %1816 = vmatpush1.bf16.msra.mxu0 %v1782
        %1817 = vmatprep.subr.bf16.mxu0 0
        %1818 = vmatpush1.bf16.msra.mxu0 %v1783
        %1819 = vmatprep.subr.bf16.mxu0 0
        %1820 = vmatpush1.bf16.msra.mxu0 %v1784
        %1821 = vmatprep.subr.bf16.mxu0 0
        %1822 = vmatpush1.bf16.msra.mxu0 %v1785
        %1823 = vmatprep.subr.bf16.mxu0 0
        %1824 = vmatpush1.bf16.msra.mxu0 %v1786
        %1825 = vmatprep.subr.bf16.mxu0 0
        %1826 = vmatpush1.bf16.msra.mxu0 %v1787
        %1827 = vmatprep.subr.bf16.mxu0 0
        %1828 = vmatpush1.bf16.msra.mxu0 %v1788
        %1829 = vmatprep.subr.bf16.mxu0 0
        %1830 = vmatpush1.bf16.msra.mxu0 %v1789
        %1831 = vmatprep.subr.bf16.mxu0 0
        %1832 = vmatpush1.bf16.msra.mxu0 %v1790
        %1833 = vmatprep.subr.bf16.mxu0 0
        %1834 = vmatpush1.bf16.msra.mxu0 %v1791
        %1835 = vmatprep.subr.bf16.mxu0 0
        %1836 = vmatpush1.bf16.msra.mxu0 %v1792
        %1837 = vmatprep.subr.bf16.mxu0 0
        %1838 = vmatpush1.bf16.msra.mxu0 %v1793
        %1839 = vmatprep.subr.bf16.mxu0 0
        %1840 = vmatpush1.bf16.msra.mxu0 %v1794
        %1841 = vmatprep.subr.bf16.mxu0 0
        %1842 = vmatpush1.bf16.msra.mxu0 %v1795
        %1843 = vmatprep.subr.bf16.mxu0 0
        %1844 = vmatpush1.bf16.msra.mxu0 %v1796
        %1845 = vmatprep.mubr.bf16.mxu0 %v1549
        %1846 = vmatmul.mubr.bf16.gmra.mrb[0].mxu0 %v1548
        %v1847 = vpop.f32.mrb[0].mxu0
        %v1848 = vadd.f32 %v1709, %v1847
        %v1849 = vpop.f32.mrb[0].mxu0
        %v1850 = vpop.f32.mrb[0].mxu0
        %v1851 = vadd.f32 %v1712, %v1850
        %v1852 = vpop.f32.mrb[0].mxu0
        %1853 = vdwg.mxu0
        %v1854 = vld [vmem:[#allocation3] sm:$0xee]
        %s1855 = scalar_lea.vmem [#allocation7], 256
        %v1856 = vld [vmem:[%s1855] sm:$0xf]
        %v1857 = vld [vmem:[%s1855 + $0x4] sm:$0xf]
        %v1858 = vld [vmem:[%s1855 + $0x8] sm:$0xf]
        %v1859 = vld [vmem:[%s1855 + $0xc] sm:$0xf]
        %v1860 = vld [vmem:[%s1855 + $0x10] sm:$0xf]
        %v1861 = vld [vmem:[%s1855 + $0x14] sm:$0xf]
        %v1862 = vld [vmem:[%s1855 + $0x18] sm:$0xf]
        %v1863 = vld [vmem:[%s1855 + $0x1c] sm:$0xf]
        %v1864 = vld [vmem:[%s1855 + $0x20] sm:$0xf]
        %v1865 = vld [vmem:[%s1855 + $0x24] sm:$0xf]
        %v1866 = vld [vmem:[%s1855 + $0x28] sm:$0xf]
        %v1867 = vld [vmem:[%s1855 + $0x2c] sm:$0xf]
        %v1868 = vld [vmem:[%s1855 + $0x30] sm:$0xf]
        %v1869 = vld [vmem:[%s1855 + $0x34] sm:$0xf]
        %v1870 = vld [vmem:[%s1855 + $0x38] sm:$0xf]
        %v1871 = vld [vmem:[%s1855 + $0x3c] sm:$0xf]
        %v1872 = vld [vmem:[%s1855 + $0x40] sm:$0xf]
        %v1873 = vld [vmem:[%s1855 + $0x44] sm:$0xf]
        %v1874 = vld [vmem:[%s1855 + $0x48] sm:$0xf]
        %v1875 = vld [vmem:[%s1855 + $0x4c] sm:$0xf]
        %v1876 = vld [vmem:[%s1855 + $0x50] sm:$0xf]
        %v1877 = vld [vmem:[%s1855 + $0x54] sm:$0xf]
        %v1878 = vld [vmem:[%s1855 + $0x58] sm:$0xf]
        %v1879 = vld [vmem:[%s1855 + $0x5c] sm:$0xf]
        %v1880 = vld [vmem:[%s1855 + $0x60] sm:$0xf]
        %v1881 = vld [vmem:[%s1855 + $0x64] sm:$0xf]
        %v1882 = vld [vmem:[%s1855 + $0x68] sm:$0xf]
        %v1883 = vld [vmem:[%s1855 + $0x6c] sm:$0xf]
        %v1884 = vld [vmem:[%s1855 + $0x70] sm:$0xf]
        %v1885 = vld [vmem:[%s1855 + $0x74] sm:$0xf]
        %v1886 = vld [vmem:[%s1855 + $0x78] sm:$0xf]
        %v1887 = vld [vmem:[%s1855 + $0x7c] sm:$0xf]
        %v1889 = vunpack.c.l.b16 %v1854
        %v1890 = vunpack.c.h.b16 %v1854
        %v1891 = vpack.c.b16 %v1544, %v1889
        %v1892 = vpack.c.b16 %v1545, %v1890
        %v1893 = vrot.slane %v1891, 1
        %v1894 = vrot.slane %v1550, 1
        %v1895 = vsel %vm939, %v1893, %v1894
        %v1896 = vrot.slane %v1892, 1
        %v1897 = vrot.slane %v1551, 1
        %v1898 = vsel %vm939, %v1896, %v1897
        %v1933 = vunpack.c.l.b16 %v1856
        %v1934 = vunpack.c.l.b16 %v1857
        %v1935 = vunpack.c.l.b16 %v1858
        %v1936 = vunpack.c.l.b16 %v1859
        %v1937 = vunpack.c.l.b16 %v1860
        %v1938 = vunpack.c.l.b16 %v1861
        %v1939 = vunpack.c.l.b16 %v1862
        %v1940 = vunpack.c.l.b16 %v1863
        %v1941 = vunpack.c.l.b16 %v1864
        %v1942 = vunpack.c.l.b16 %v1865
        %v1943 = vunpack.c.l.b16 %v1866
        %v1944 = vunpack.c.l.b16 %v1867
        %v1945 = vunpack.c.l.b16 %v1868
        %v1946 = vunpack.c.l.b16 %v1869
        %v1947 = vunpack.c.l.b16 %v1870
        %v1948 = vunpack.c.l.b16 %v1871
        %v1949 = vunpack.c.l.b16 %v1872
        %v1950 = vunpack.c.l.b16 %v1873
        %v1951 = vunpack.c.l.b16 %v1874
        %v1952 = vunpack.c.l.b16 %v1875
        %v1953 = vunpack.c.l.b16 %v1876
        %v1954 = vunpack.c.l.b16 %v1877
        %v1955 = vunpack.c.l.b16 %v1878
        %v1956 = vunpack.c.l.b16 %v1879
        %v1957 = vunpack.c.l.b16 %v1880
        %v1958 = vunpack.c.l.b16 %v1881
        %v1959 = vunpack.c.l.b16 %v1882
        %v1960 = vunpack.c.l.b16 %v1883
        %v1961 = vunpack.c.l.b16 %v1884
        %v1962 = vunpack.c.l.b16 %v1885
        %v1963 = vunpack.c.l.b16 %v1886
        %v1964 = vunpack.c.l.b16 %v1887
        %v1965 = vpack.c.b16 %v1934, %v1933
        %v1966 = vpack.c.b16 %v1936, %v1935
        %v1967 = vpack.c.b16 %v1938, %v1937
        %v1968 = vpack.c.b16 %v1940, %v1939
        %v1969 = vpack.c.b16 %v1942, %v1941
        %v1970 = vpack.c.b16 %v1944, %v1943
        %v1971 = vpack.c.b16 %v1946, %v1945
        %v1972 = vpack.c.b16 %v1948, %v1947
        %v1973 = vpack.c.b16 %v1950, %v1949
        %v1974 = vpack.c.b16 %v1952, %v1951
        %v1975 = vpack.c.b16 %v1954, %v1953
        %v1976 = vpack.c.b16 %v1956, %v1955
        %v1977 = vpack.c.b16 %v1958, %v1957
        %v1978 = vpack.c.b16 %v1960, %v1959
        %v1979 = vpack.c.b16 %v1962, %v1961
        %v1980 = vpack.c.b16 %v1964, %v1963
        %1997 = vmatprep.subr.bf16.mxu0 0
        %1998 = vmatpush1.bf16.msra.mxu0 %v1965
        %1999 = vmatprep.subr.bf16.mxu0 0
        %2000 = vmatpush1.bf16.msra.mxu0 %v1966
        %2001 = vmatprep.subr.bf16.mxu0 0
        %2002 = vmatpush1.bf16.msra.mxu0 %v1967
        %2003 = vmatprep.subr.bf16.mxu0 0
        %2004 = vmatpush1.bf16.msra.mxu0 %v1968
        %2005 = vmatprep.subr.bf16.mxu0 0
        %2006 = vmatpush1.bf16.msra.mxu0 %v1969
        %2007 = vmatprep.subr.bf16.mxu0 0
        %2008 = vmatpush1.bf16.msra.mxu0 %v1970
        %2009 = vmatprep.subr.bf16.mxu0 0
        %2010 = vmatpush1.bf16.msra.mxu0 %v1971
        %2011 = vmatprep.subr.bf16.mxu0 0
        %2012 = vmatpush1.bf16.msra.mxu0 %v1972
        %2013 = vmatprep.subr.bf16.mxu0 0
        %2014 = vmatpush1.bf16.msra.mxu0 %v1973
        %2015 = vmatprep.subr.bf16.mxu0 0
        %2016 = vmatpush1.bf16.msra.mxu0 %v1974
        %2017 = vmatprep.subr.bf16.mxu0 0
        %2018 = vmatpush1.bf16.msra.mxu0 %v1975
        %2019 = vmatprep.subr.bf16.mxu0 0
        %2020 = vmatpush1.bf16.msra.mxu0 %v1976
        %2021 = vmatprep.subr.bf16.mxu0 0
        %2022 = vmatpush1.bf16.msra.mxu0 %v1977
        %2023 = vmatprep.subr.bf16.mxu0 0
        %2024 = vmatpush1.bf16.msra.mxu0 %v1978
        %2025 = vmatprep.subr.bf16.mxu0 0
        %2026 = vmatpush1.bf16.msra.mxu0 %v1979
        %2027 = vmatprep.subr.bf16.mxu0 0
        %2028 = vmatpush1.bf16.msra.mxu0 %v1980
        %2029 = vmatprep.mubr.bf16.mxu0 %v1898
        %2030 = vmatmul.mubr.bf16.gmra.mrb[0].mxu0 %v1895
        %v2031 = vpop.f32.mrb[0].mxu0
        %v2032 = vadd.f32 0.0, %v2031
        %v2033 = vpop.f32.mrb[0].mxu0
        %v2034 = vpop.f32.mrb[0].mxu0
        %v2035 = vadd.f32 0.0, %v2034
        %v2036 = vpop.f32.mrb[0].mxu0
        %2037 = vdwg.mxu0
        %v2038 = vadd.f32 %v1848, %v2032
        %v2039 = vadd.f32 %v1851, %v2035
        %v2040 = vld [vmem:[%s8] sm:$0x1]
        %v2042 = vlaneseq
        %v2043 = vshrl.u32 %v2042, 7
        %v2044 = vsub.s32 0, %v2043
        %v2045 = vrot.slane %v2040, %v2044
        %v2047 = vmul.f32 %v2038, %v2045
        %v2048 = vmul.f32 %v2039, %v2045
        %v2049 = vld [vmem:[%s9] sm:$0x1]
        %v2051 = vlaneseq
        %v2052 = vshrl.u32 %v2051, 7
        %v2053 = vsub.s32 0, %v2052
        %v2054 = vrot.slane %v2049, %v2053
        %v2056 = vadd.f32 %v2047, %v2054
        %v2057 = vadd.f32 %v2048, %v2054
        %v2058 = vmax.f32 %v2056, 0.0
        %v2059 = vmax.f32 %v2057, 0.0
        %v2060 = vadd.f32 %v2058, %v2059
        %v2061 = vrot.slane %v2060, 4
        %v2062 = vadd.f32 %v2060, %v2061
        %v2063 = vrot.slane %v2062, 2
        %v2064 = vadd.f32 %v2062, %v2063
        %v2065 = vrot.slane %v2064, 1
        %v2066 = vadd.f32 %v2064, %v2065
        %v2067 = vld [vmem:[%s10] sm:$0xff]
        %v2068 = vld [vmem:[%s10 + $0x8] sm:$0xff]
        %v2069 = vld [vmem:[%s10 + $0x10] sm:$0xff]
        %v2070 = vld [vmem:[%s10 + $0x18] sm:$0xff]
        %v2071 = vld [vmem:[%s10 + $0x20] sm:$0xff]
        %v2072 = vld [vmem:[%s10 + $0x28] sm:$0xff]
        %v2073 = vld [vmem:[%s10 + $0x30] sm:$0xff]
        %v2074 = vld [vmem:[%s10 + $0x38] sm:$0xff]
        %v2075 = vld [vmem:[%s10 + $0x40] sm:$0xff]
        %v2076 = vld [vmem:[%s10 + $0x48] sm:$0xff]
        %v2077 = vld [vmem:[%s10 + $0x50] sm:$0xff]
        %v2078 = vld [vmem:[%s10 + $0x58] sm:$0xff]
        %v2079 = vld [vmem:[%s10 + $0x60] sm:$0xff]
        %v2080 = vld [vmem:[%s10 + $0x68] sm:$0xff]
        %v2081 = vld [vmem:[%s10 + $0x70] sm:$0xff]
        %v2082 = vld [vmem:[%s10 + $0x78] sm:$0xff]
        %v2083 = vld [vmem:[%s11] sm:$0x1]
        %2084 = vmatprep.subr.mxu0 0.0
        %2085 = vmatpush1.msra.mxu0 %v2067
        %2086 = vmatprep.subr.mxu0 0.0
        %2087 = vmatpush1.msra.mxu0 %v2068
        %2088 = vmatprep.subr.mxu0 0.0
        %2089 = vmatpush1.msra.mxu0 %v2069
        %2090 = vmatprep.subr.mxu0 0.0
        %2091 = vmatpush1.msra.mxu0 %v2070
        %2092 = vmatprep.subr.mxu0 0.0
        %2093 = vmatpush1.msra.mxu0 %v2071
        %2094 = vmatprep.subr.mxu0 0.0
        %2095 = vmatpush1.msra.mxu0 %v2072
        %2096 = vmatprep.subr.mxu0 0.0
        %2097 = vmatpush1.msra.mxu0 %v2073
        %2098 = vmatprep.subr.mxu0 0.0
        %2099 = vmatpush1.msra.mxu0 %v2074
        %2100 = vmatprep.subr.mxu0 0.0
        %2101 = vmatpush1.msra.mxu0 %v2075
        %2102 = vmatprep.subr.mxu0 0.0
        %2103 = vmatpush1.msra.mxu0 %v2076
        %2104 = vmatprep.subr.mxu0 0.0
        %2105 = vmatpush1.msra.mxu0 %v2077
        %2106 = vmatprep.subr.mxu0 0.0
        %2107 = vmatpush1.msra.mxu0 %v2078
        %2108 = vmatprep.subr.mxu0 0.0
        %2109 = vmatpush1.msra.mxu0 %v2079
        %2110 = vmatprep.subr.mxu0 0.0
        %2111 = vmatpush1.msra.mxu0 %v2080
        %2112 = vmatprep.subr.mxu0 0.0
        %2113 = vmatpush1.msra.mxu0 %v2081
        %2114 = vmatprep.subr.mxu0 0.0
        %2115 = vmatpush1.msra.mxu0 %v2082
        %2116 = vmatprep.subr.mxu0 0.0
        %2117 = vmatpush1.msra.mxu0 0.0
        %2118 = vmatprep.subr.mxu0 0.0
        %2119 = vmatpush1.msra.mxu0 0.0
        %2120 = vmatprep.subr.mxu0 0.0
        %2121 = vmatpush1.msra.mxu0 0.0
        %2122 = vmatprep.subr.mxu0 0.0
        %2123 = vmatpush1.msra.mxu0 0.0
        %2124 = vmatprep.subr.mxu0 0.0
        %2125 = vmatpush1.msra.mxu0 0.0
        %2126 = vmatprep.subr.mxu0 0.0
        %2127 = vmatpush1.msra.mxu0 0.0
        %2128 = vmatprep.subr.mxu0 0.0
        %2129 = vmatpush1.msra.mxu0 0.0
        %2130 = vmatprep.subr.mxu0 0.0
        %2131 = vmatpush1.msra.mxu0 0.0
        %2132 = vmatprep.subr.mxu0 0.0
        %2133 = vmatpush1.msra.mxu0 0.0
        %2134 = vmatprep.subr.mxu0 0.0
        %2135 = vmatpush1.msra.mxu0 0.0
        %2136 = vmatprep.subr.mxu0 0.0
        %2137 = vmatpush1.msra.mxu0 0.0
        %2138 = vmatprep.subr.mxu0 0.0
        %2139 = vmatpush1.msra.mxu0 0.0
        %2140 = vmatprep.subr.mxu0 0.0
        %2141 = vmatpush1.msra.mxu0 0.0
        %2142 = vmatprep.subr.mxu0 0.0
        %2143 = vmatpush1.msra.mxu0 0.0
        %2144 = vmatprep.subr.mxu0 0.0
        %2145 = vmatpush1.msra.mxu0 0.0
        %2146 = vmatprep.subr.mxu0 0.0
        %2147 = vmatpush1.msra.mxu0 0.0
        %2148 = vmatprep.mubr.f32.mxu0 0.0
        %2149 = vmatmul.mubr.f32.gmra.mrb[0].mxu0 %v2066
        %v2150 = vpop.f32.mrb[0].mxu0
        %v2151 = vadd.f32 %v2083, %v2150
        %v2152 = vpop.f32.mrb[0].mxu0
        %2153 = vdwg.mxu0
        %vm2154 = vcmask 16384
        %2155 = vst.msk [vmem:[%s435] sm:$0x1] %vm2154, %v2151
        %s2156 = sand.u32 %s293, 1
        %s2157 = scalar_lea.sflag [#allocation6], %s2156
        %s2158 = sand.u32 %s293, 1
        %s2159 = scalar_lea.vmem [#allocation9], %s2158
        // Predicated region
        $region77: #{tpu_custom_call.1} parent=67 // pred_check
          %p2160 = pneg %p303
        $region78: #{tpu_custom_call.1} parent=67 // pred_check_branch
          %2162 = sbr.rel (%p2160) target = $region80
        $region79: #{tpu_custom_call.1} parent=67 // pred_region
          %s2164 = ssub.s32 16, 16
          %2165 = vsyncadd %s2157, %s2164
          %s2166 = smul.addr %s28, 16
          %s2167 = scalar_lea.hbm %s12, %s2166
          %s2169 = sshll.u32 %s2159, 4
          %s2170 = int_to_ptr.vmem [resolvable:$true] %s2169
          %2172 = dma.vmem_to_hbm [thread:$0]  %s2170, 16, %s2167, %s2157
        $region80: #{tpu_custom_call.1} parent=67 // pred_fallthru
          _
      $region68: #{tpu_custom_call.1} parent=5 // pred_fallthru
        _
      %p2173 = scmp.le.s32.totalorder 2, %s23
      // Predicated region
      $region81: #{tpu_custom_call.1} parent=5 // pred_check
        %p2174 = pneg %p2173
      $region82: #{tpu_custom_call.1} parent=5 // pred_check_branch
        %2176 = sbr.rel (%p2174) target = $region84
      $region83: #{tpu_custom_call.1} parent=5 // pred_region
        %s2177 = ssub.s32 %s23, 2
        // Predicated region
        $region85: #{tpu_custom_call.1} parent=83 // pred_check
          %p2178 = pneg %p309
        $region86: #{tpu_custom_call.1} parent=83 // pred_check_branch
          %2180 = sbr.rel (%p2178) target = $region88
        $region87: #{tpu_custom_call.1} parent=83 // pred_region
          %s2181 = sand.u32 %s294, 1
          %s2182 = scalar_lea.sflag [#allocation6], %s2181
          %s2183 = sand.u32 %s294, 1
          %s2184 = scalar_lea.vmem [#allocation9], %s2183
          %2185 = dma.done %s2182, 16
        $region88: #{tpu_custom_call.1} parent=83 // pred_fallthru
          _
      $region84: #{tpu_custom_call.1} parent=5 // pred_fallthru
        _
    $region6: #{tpu_custom_call.1} parent=1 // loop_footer
      %s27 = sadd.s32 1, %s23
    $region7: #{tpu_custom_call.1} parent=1 // loop_footer_branch
      %22 = sbr.rel target = $region3
    $region8: #{tpu_custom_call.1} parent=1 // loop_exit
      _
    %2186 = vsyncpa [#allocation5], 1
    %s2187 = scalar_lea.sflag [#allocation5], 1
    %2188 = vsyncpa %s2187, 1
    %2189 = vsyncpa [#allocation8], 1
    %2190 = vsyncpa [#allocation6], 1
    %s2191 = scalar_lea.sflag [#allocation6], 1
    %2192 = vsyncpa %s2191, 1

</llo_original>
